<compile_context>
chip_gen: v7x
topology: tpu7x:2x2x1
jax: 0.10.0
libtpu: 0.0.40
codegen_flags: <defaults>
</compile_context>

<pallas_src>
import jax
import jax.numpy as jnp
from jax.experimental import pallas as pl
from jax.experimental.pallas import tpu as pltpu

D = 768  # hidden size of the Linear(768, 768)


def _lin_cat_kernel(en_ref, hi_ref, wt_ref, b_ref, out_ref):
    # wt_ref holds W^T with shape (in, out); plain (1,)x(0,) contraction so no
    # per-step transpose of the weight is needed.  Two dots against the same
    # VMEM-resident weight; each result lands directly in its output half.
    w = wt_ref[...]
    b = b_ref[...]
    out_ref[:, :D] = (
        jnp.dot(en_ref[...], w, preferred_element_type=jnp.float32) + b
    ).astype(out_ref.dtype)
    out_ref[:, D:] = (
        jnp.dot(hi_ref[...], w, preferred_element_type=jnp.float32) + b
    ).astype(out_ref.dtype)


def _choose_tile_and_pad(B):
    """Returns (tile_m, padded_B).

    - padded_B is a multiple of 8 (sublane); tail rows are zero-padded in the
      wrapper and sliced off after the call.
    - tile_m <= 256 so double-buffered en/hi/out blocks + the resident weight
      fit v5e's 16 MiB default scoped VMEM (v6e/v7x have more headroom).
    - whenever possible we leave >= 2 grid steps so the "parallel" grid axis
      can shard across both v7x TensorCores.
    """
    Bp = max(8, -(-B // 8) * 8)
    if Bp <= 16:
        return Bp, Bp  # tiny batch: single tile, grid_m == 1
    # Large batches that aren't a multiple of 128: pad further so we can keep a
    # reasonably large tile instead of degrading to 8-row tiles.
    if Bp > 128 and Bp % 128 != 0:
        Bp = -(-B // 128) * 128
    for tm in (256, 128, 64, 32, 16, 8):
        if Bp % tm == 0 and Bp // tm >= 2:
            return tm, Bp
    return Bp, Bp


def model_lin_forward(em_en, em_hi, weight, bias, *, use_bf16=False):
    """em_en, em_hi: (B, 768). weight: (768_out, 768_in) (PyTorch layout),
    bias: (768,).  Returns (B, 2, 768) float32 matching
    torch.cat((lin(en)[:, None], lin(hi)[:, None]), dim=1).
    """
    B = em_en.shape[0]
    tm, Bp = _choose_tile_and_pad(B)
    grid_m = Bp // tm

    if Bp != B:
        pad = ((0, Bp - B), (0, 0))
        em_en = jnp.pad(em_en, pad)
        em_hi = jnp.pad(em_hi, pad)

    # Hoisted, one-time W^T (in, out).  Bias stays f32 for exact accumulation.
    w_t = weight.T
    b2d = bias.reshape(1, D).astype(jnp.float32)

    if use_bf16:
        # Halves the dominant weight DMA and uses the MXU's native bf16 path;
        # accumulation stays f32.  Only use when a ~1e-2 tolerance is OK.
        w_t = w_t.astype(jnp.bfloat16)
        em_en = em_en.astype(jnp.bfloat16)
        em_hi = em_hi.astype(jnp.bfloat16)

    in_bytes = 2 if use_bf16 else 4
    cost = pl.CostEstimate(
        flops=2 * (2 * Bp) * D * D,
        transcendentals=0,
        bytes_accessed=in_bytes * (2 * Bp * D + D * D) + 4 * (D + 2 * Bp * D),
    )

    out = pl.pallas_call(
        _lin_cat_kernel,
        out_shape=jax.ShapeDtypeStruct((Bp, 2 * D), jnp.float32),
        grid_spec=pltpu.PrefetchScalarGridSpec(
            num_scalar_prefetch=0,
            grid=(grid_m,),
            in_specs=[
                pl.BlockSpec((tm, D), lambda i: (i, 0)),   # en rows (tiled)
                pl.BlockSpec((tm, D), lambda i: (i, 0)),   # hi rows (tiled)
                pl.BlockSpec((D, D), lambda i: (0, 0)),    # W^T: VMEM-resident
                pl.BlockSpec((1, D), lambda i: (0, 0)),    # bias: VMEM-resident
            ],
            out_specs=pl.BlockSpec((tm, 2 * D), lambda i: (i, 0)),
        ),
        compiler_params=pltpu.CompilerParams(
            dimension_semantics=("parallel",),
        ),
        cost_estimate=cost,
    )(em_en, em_hi, w_t, b2d)

    out = out[:B]
    # Free row-major reshape: (B, 1536) -> (B, 2, 768) == unsqueeze(1)+cat(dim=1)
    return out.reshape(B, 2, D)


if __name__ == "__main__":
    key = jax.random.PRNGKey(0)
    k_en, k_hi, k_w, k_b = jax.random.split(key, 4)

    B = 8
    em_en = jax.random.normal(k_en, (B, D), dtype=jnp.float32)
    em_hi = jax.random.normal(k_hi, (B, D), dtype=jnp.float32)

    # Deterministic parameter init (nn.Linear(768, 768): weight (768, 768), bias (768,))
    bound = 1.0 / (D ** 0.5)
    weight = jax.random.uniform(k_w, (D, D), dtype=jnp.float32,
                                minval=-bound, maxval=bound)
    bias = jax.random.uniform(k_b, (D,), dtype=jnp.float32,
                              minval=-bound, maxval=bound)

    out = jax.block_until_ready(model_lin_forward(em_en, em_hi, weight, bias))

    # Sanity check against plain-JAX reference
    ref_en = em_en @ weight.T + bias
    ref_hi = em_hi @ weight.T + bias
    ref = jnp.stack([ref_en, ref_hi], axis=1)   # (B, 2, D)
    assert out.shape == (B, 2, D), out.shape
    assert jnp.allclose(out, ref, atol=1e-4, rtol=1e-4)

    print("KERNEL_OK")
</pallas_src>

<mosaic_0001>
module attributes {stable_mosaic.version = 11 : i64} {
  func.func @_lin_cat_kernel(%arg0: i32, %arg1: memref<8x768xf32, #tpu.memory_space<vmem>>, %arg2: memref<8x768xf32, #tpu.memory_space<vmem>>, %arg3: memref<768x768xf32, #tpu.memory_space<vmem>>, %arg4: memref<1x768xf32, #tpu.memory_space<vmem>>, %arg5: memref<8x1536xf32, #tpu.memory_space<vmem>>) attributes {dimension_semantics = [#tpu.dimension_semantics<parallel>], iteration_bounds = array<i64: 1>, scalar_prefetch = 0 : i64, scratch_operands = 0 : i64, tpu.core_type = #tpu.core_type<tc>, window_params = [{transform_indices = @transform_0, window_bounds = array<i64: 8, 768>}, {transform_indices = @transform_1, window_bounds = array<i64: 8, 768>}, {pipeline_mode = #tpu.pipeline_mode<synchronous>, transform_indices = @transform_2, window_bounds = array<i64: 768, 768>}, {pipeline_mode = #tpu.pipeline_mode<synchronous>, transform_indices = @transform_3, window_bounds = array<i64: 1, 768>}, {transform_indices = @transform_4, window_bounds = array<i64: 8, 1536>}]} {
    %c0 = arith.constant 0 : index
    %c0_0 = arith.constant 0 : index
    %0 = vector.load %arg3[%c0, %c0_0] : memref<768x768xf32, #tpu.memory_space<vmem>>, vector<768x768xf32>
    %c0_1 = arith.constant 0 : index
    %c0_2 = arith.constant 0 : index
    %1 = vector.load %arg4[%c0_1, %c0_2] : memref<1x768xf32, #tpu.memory_space<vmem>>, vector<1x768xf32>
    %c0_3 = arith.constant 0 : index
    %c0_4 = arith.constant 0 : index
    %2 = vector.load %arg1[%c0_3, %c0_4] : memref<8x768xf32, #tpu.memory_space<vmem>>, vector<8x768xf32>
    %cst = arith.constant dense<0.000000e+00> : vector<8x768xf32>
    %3 = tpu.matmul %2, %0, %cst {dimension_numbers = #tpu.dot_dimension_numbers<[1], [0], [0], [1], [0, 0, 1, 1], [], []>} : vector<8x768xf32>, vector<768x768xf32>, vector<8x768xf32> -> vector<8x768xf32>
    %4 = vector.broadcast %1 : vector<1x768xf32> to vector<8x768xf32>
    %5 = arith.addf %3, %4 : vector<8x768xf32>
    %c0_5 = arith.constant 0 : index
    %c0_6 = arith.constant 0 : index
    %6 = vector.load %arg5[%c0_5, %c0_6] : memref<8x1536xf32, #tpu.memory_space<vmem>>, vector<8x768xf32>
    tpu.vector_store %arg5[%c0_5, %c0_6], %5 {strides = array<i32>} : memref<8x1536xf32, #tpu.memory_space<vmem>>, vector<8x768xf32>,
    %c0_7 = arith.constant 0 : index
    %c0_8 = arith.constant 0 : index
    %7 = vector.load %arg2[%c0_7, %c0_8] : memref<8x768xf32, #tpu.memory_space<vmem>>, vector<8x768xf32>
    %cst_9 = arith.constant dense<0.000000e+00> : vector<8x768xf32>
    %8 = tpu.matmul %7, %0, %cst_9 {dimension_numbers = #tpu.dot_dimension_numbers<[1], [0], [0], [1], [0, 0, 1, 1], [], []>} : vector<8x768xf32>, vector<768x768xf32>, vector<8x768xf32> -> vector<8x768xf32>
    %9 = vector.broadcast %1 : vector<1x768xf32> to vector<8x768xf32>
    %10 = arith.addf %8, %9 : vector<8x768xf32>
    %c0_10 = arith.constant 0 : index
    %c768 = arith.constant 768 : index
    %11 = vector.load %arg5[%c0_10, %c768] : memref<8x1536xf32, #tpu.memory_space<vmem>>, vector<8x768xf32>
    tpu.vector_store %arg5[%c0_10, %c768], %10 {strides = array<i32>} : memref<8x1536xf32, #tpu.memory_space<vmem>>, vector<8x768xf32>,
    return
  }
  func.func @transform_0(%arg0: i32) -> (i32, i32) {
    %c0_i32 = arith.constant 0 : i32
    %c0_i32_0 = arith.constant 0 : i32
    return %arg0, %c0_i32 : i32, i32
  }
  func.func @transform_1(%arg0: i32) -> (i32, i32) {
    %c0_i32 = arith.constant 0 : i32
    %c0_i32_0 = arith.constant 0 : i32
    return %arg0, %c0_i32 : i32, i32
  }
  func.func @transform_2(%arg0: i32) -> (i32, i32) {
    %c0_i32 = arith.constant 0 : i32
    %c0_i32_0 = arith.constant 0 : i32
    %c0_i32_1 = arith.constant 0 : i32
    return %c0_i32, %c0_i32_0 : i32, i32
  }
  func.func @transform_3(%arg0: i32) -> (i32, i32) {
    %c0_i32 = arith.constant 0 : i32
    %c0_i32_0 = arith.constant 0 : i32
    %c0_i32_1 = arith.constant 0 : i32
    return %c0_i32, %c0_i32_0 : i32, i32
  }
  func.func @transform_4(%arg0: i32) -> (i32, i32) {
    %c0_i32 = arith.constant 0 : i32
    %c0_i32_0 = arith.constant 0 : i32
    return %arg0, %c0_i32 : i32, i32
  }
}

</mosaic_0001>

<llo_original>
// kernel: tpu_custom_call.1
$region0: #{tpu_custom_call.1}
  #allocation0 [shape = 'u32[]', space=smem, size = 0x4, offset = 0x4, fixed_abs, tag = 'smem constant byte address 0x4 - core index']
  #allocation1 [shape = 'u32[144,128]{1,0:T(1,128)}', space=vmem, size = 0x12000, scoped, tag = 'internal scratch']
  %s0 = inlined_call_operand.hbm [shape: f32[8,768], index: 0, kind: input, shape index: {}]
  %s1 = inlined_call_operand.hbm [shape: f32[8,768], index: 1, kind: input, shape index: {}]
  %s2 = inlined_call_operand.hbm [shape: f32[768,768], index: 2, kind: input, shape index: {}]
  %s3 = inlined_call_operand.hbm [shape: f32[1,768], index: 3, kind: input, shape index: {}]
  %s4 = inlined_call_operand.hbm [shape: f32[8,1536], index: 4, kind: output, shape index: {}]
  %s5 = sld [smem:[#allocation0]]
  $region42: #{tpu_custom_call.1} parent=0
    _
  %s7 = ssub.s32 1, %s5
  %s8 = scalar_select 0, %s7, %s5
  $region1: #{tpu_custom_call.1} parent=0
    #allocation2 [shape = 'u8[24576]{0}', space=vmem, size = 0x6000, scoped, tag = 'input window, operand 0, single buffered']
    #allocation3 [shape = 's32[1]{0}', space=sflag, size = 0x4, scoped, tag = 'scoped memory for tpu_custom_call.1']
    #allocation4 [shape = 's32[1]{0}', space=sflag, size = 0x4, scoped, tag = 'scoped memory for tpu_custom_call.1']
    #allocation5 [shape = 'u8[24576]{0}', space=vmem, size = 0x6000, scoped, tag = 'input window, operand 1, single buffered']
    #allocation6 [shape = 's32[1]{0}', space=sflag, size = 0x4, scoped, tag = 'scoped memory for tpu_custom_call.1']
    #allocation7 [shape = 'u8[2359296]{0}', space=vmem, size = 0x240000, scoped, tag = 'input window, operand 2, single buffered']
    #allocation8 [shape = 'u8[3072]{0}', space=vmem, size = 0xc00, scoped, tag = 'input window, operand 3, single buffered']
    #allocation9 [shape = 's32[1]{0}', space=sflag, size = 0x4, scoped, tag = 'scoped memory for tpu_custom_call.1']
    #allocation10 [shape = 'u8[49152]{0}', space=vmem, size = 0xc000, scoped, tag = 'output window, operand 0, single buffered']
    %9 = vsyncpa [#allocation3], 0
    %10 = vsyncpa [#allocation6], 0
    %11 = vsyncpa [#allocation9], 0
    %12 = vsyncpa [#allocation4], 0
    // Predicated region
    $region2: #{tpu_custom_call.1} parent=1 // pred_check
      _
    $region3: #{tpu_custom_call.1} parent=1 // pred_check_branch
      %14 = sbr.rel (0) target = $region5
    $region4: #{tpu_custom_call.1} parent=1 // pred_region
      %s16 = ssub.s32 768, 768
      %17 = vsyncadd [#allocation3], %s16
      %s19 = sshll.u32 [#allocation2], 4
      %s20 = int_to_ptr.vmem [resolvable:$true] %s19
      %22 = dma.hbm_to_vmem [thread:$0]  %s0, 768, %s20, [#allocation3]
    $region5: #{tpu_custom_call.1} parent=1 // pred_fallthru
      _
    // Predicated region
    $region6: #{tpu_custom_call.1} parent=1 // pred_check
      _
    $region7: #{tpu_custom_call.1} parent=1 // pred_check_branch
      %24 = sbr.rel (0) target = $region9
    $region8: #{tpu_custom_call.1} parent=1 // pred_region
      %s26 = ssub.s32 768, 768
      %27 = vsyncadd [#allocation6], %s26
      %s29 = sshll.u32 [#allocation5], 4
      %s30 = int_to_ptr.vmem [resolvable:$true] %s29
      %32 = dma.hbm_to_vmem [thread:$0]  %s1, 768, %s30, [#allocation6]
    $region9: #{tpu_custom_call.1} parent=1 // pred_fallthru
      _
    // Predicated region
    $region10: #{tpu_custom_call.1} parent=1 // pred_check
      _
    $region11: #{tpu_custom_call.1} parent=1 // pred_check_branch
      %34 = sbr.rel (0) target = $region13
    $region12: #{tpu_custom_call.1} parent=1 // pred_region
      %s36 = ssub.s32 73728, 73728
      %37 = vsyncadd [#allocation6], %s36
      %s38 = sshll.u32 [#allocation7], 4
      %s39 = int_to_ptr.vmem [resolvable:$true] %s38
      %44 = dma.hbm_to_vmem [thread:$0]  %s2, 73728, %s39, [#allocation6], 768, 768, 48
    $region13: #{tpu_custom_call.1} parent=1 // pred_fallthru
      _
    // Predicated region
    $region14: #{tpu_custom_call.1} parent=1 // pred_check
      _
    $region15: #{tpu_custom_call.1} parent=1 // pred_check_branch
      %46 = sbr.rel (0) target = $region17
    $region16: #{tpu_custom_call.1} parent=1 // pred_region
      %s48 = ssub.s32 96, 96
      %49 = vsyncadd [#allocation9], %s48
      %s51 = sshll.u32 [#allocation8], 4
      %s52 = int_to_ptr.vmem [resolvable:$true] %s51
      %54 = dma.hbm_to_vmem [thread:$0]  %s3, 96, %s52, [#allocation9]
    $region17: #{tpu_custom_call.1} parent=1 // pred_fallthru
      _
    // Predicated region
    $region18: #{tpu_custom_call.1} parent=1 // pred_check
      _
    $region19: #{tpu_custom_call.1} parent=1 // pred_check_branch
      %56 = sbr.rel (0) target = $region21
    $region20: #{tpu_custom_call.1} parent=1 // pred_region
      %57 = dma.done [#allocation3], 768
    $region21: #{tpu_custom_call.1} parent=1 // pred_fallthru
      _
    // Predicated region
    $region22: #{tpu_custom_call.1} parent=1 // pred_check
      _
    $region23: #{tpu_custom_call.1} parent=1 // pred_check_branch
      %59 = sbr.rel (0) target = $region25
    $region24: #{tpu_custom_call.1} parent=1 // pred_region
      %60 = dma.done [#allocation6], 768
    $region25: #{tpu_custom_call.1} parent=1 // pred_fallthru
      _
    // Predicated region
    $region26: #{tpu_custom_call.1} parent=1 // pred_check
      _
    $region27: #{tpu_custom_call.1} parent=1 // pred_check_branch
      %62 = sbr.rel (0) target = $region29
    $region28: #{tpu_custom_call.1} parent=1 // pred_region
      %63 = dma.done [#allocation6], 73728
    $region29: #{tpu_custom_call.1} parent=1 // pred_fallthru
      _
    // Predicated region
    $region30: #{tpu_custom_call.1} parent=1 // pred_check
      _
    $region31: #{tpu_custom_call.1} parent=1 // pred_check_branch
      %65 = sbr.rel (0) target = $region33
    $region32: #{tpu_custom_call.1} parent=1 // pred_region
      %66 = dma.done [#allocation9], 96
    $region33: #{tpu_custom_call.1} parent=1 // pred_fallthru
      _
    %v67 = vld [vmem:[#allocation7] sm:$0xff]
    %v68 = vld [vmem:[#allocation7 + $0x8] sm:$0xff]
    %v69 = vld [vmem:[#allocation7 + $0x10] sm:$0xff]
    %v70 = vld [vmem:[#allocation7 + $0x18] sm:$0xff]
    %v71 = vld [vmem:[#allocation7 + $0x20] sm:$0xff]
    %v72 = vld [vmem:[#allocation7 + $0x28] sm:$0xff]
    %v73 = vld [vmem:[#allocation7 + $0x30] sm:$0xff]
    %v74 = vld [vmem:[#allocation7 + $0x38] sm:$0xff]
    %v75 = vld [vmem:[#allocation7 + $0x40] sm:$0xff]
    %v76 = vld [vmem:[#allocation7 + $0x48] sm:$0xff]
    %v77 = vld [vmem:[#allocation7 + $0x50] sm:$0xff]
    %v78 = vld [vmem:[#allocation7 + $0x58] sm:$0xff]
    %v79 = vld [vmem:[#allocation7 + $0x60] sm:$0xff]
    %v80 = vld [vmem:[#allocation7 + $0x68] sm:$0xff]
    %v81 = vld [vmem:[#allocation7 + $0x70] sm:$0xff]
    %v82 = vld [vmem:[#allocation7 + $0x78] sm:$0xff]
    %v83 = vld [vmem:[#allocation7 + $0x80] sm:$0xff]
    %v84 = vld [vmem:[#allocation7 + $0x88] sm:$0xff]
    %v85 = vld [vmem:[#allocation7 + $0x90] sm:$0xff]
    %v86 = vld [vmem:[#allocation7 + $0x98] sm:$0xff]
    %v87 = vld [vmem:[#allocation7 + $0xa0] sm:$0xff]
    %v88 = vld [vmem:[#allocation7 + $0xa8] sm:$0xff]
    %v89 = vld [vmem:[#allocation7 + $0xb0] sm:$0xff]
    %v90 = vld [vmem:[#allocation7 + $0xb8] sm:$0xff]
    %v91 = vld [vmem:[#allocation7 + $0xc0] sm:$0xff]
    %v92 = vld [vmem:[#allocation7 + $0xc8] sm:$0xff]
    %v93 = vld [vmem:[#allocation7 + $0xd0] sm:$0xff]
    %v94 = vld [vmem:[#allocation7 + $0xd8] sm:$0xff]
    %v95 = vld [vmem:[#allocation7 + $0xe0] sm:$0xff]
    %v96 = vld [vmem:[#allocation7 + $0xe8] sm:$0xff]
    %v97 = vld [vmem:[#allocation7 + $0xf0] sm:$0xff]
    %v98 = vld [vmem:[#allocation7 + $0xf8] sm:$0xff]
    %v99 = vld [vmem:[#allocation7 + $0x100] sm:$0xff]
    %v100 = vld [vmem:[#allocation7 + $0x108] sm:$0xff]
    %v101 = vld [vmem:[#allocation7 + $0x110] sm:$0xff]
    %v102 = vld [vmem:[#allocation7 + $0x118] sm:$0xff]
    %v103 = vld [vmem:[#allocation7 + $0x120] sm:$0xff]
    %v104 = vld [vmem:[#allocation7 + $0x128] sm:$0xff]
    %v105 = vld [vmem:[#allocation7 + $0x130] sm:$0xff]
    %v106 = vld [vmem:[#allocation7 + $0x138] sm:$0xff]
    %v107 = vld [vmem:[#allocation7 + $0x140] sm:$0xff]
    %v108 = vld [vmem:[#allocation7 + $0x148] sm:$0xff]
    %v109 = vld [vmem:[#allocation7 + $0x150] sm:$0xff]
    %v110 = vld [vmem:[#allocation7 + $0x158] sm:$0xff]
    %v111 = vld [vmem:[#allocation7 + $0x160] sm:$0xff]
    %v112 = vld [vmem:[#allocation7 + $0x168] sm:$0xff]
    %v113 = vld [vmem:[#allocation7 + $0x170] sm:$0xff]
    %v114 = vld [vmem:[#allocation7 + $0x178] sm:$0xff]
    %v115 = vld [vmem:[#allocation7 + $0x180] sm:$0xff]
    %v116 = vld [vmem:[#allocation7 + $0x188] sm:$0xff]
    %v117 = vld [vmem:[#allocation7 + $0x190] sm:$0xff]
    %v118 = vld [vmem:[#allocation7 + $0x198] sm:$0xff]
    %v119 = vld [vmem:[#allocation7 + $0x1a0] sm:$0xff]
    %v120 = vld [vmem:[#allocation7 + $0x1a8] sm:$0xff]
    %v121 = vld [vmem:[#allocation7 + $0x1b0] sm:$0xff]
    %v122 = vld [vmem:[#allocation7 + $0x1b8] sm:$0xff]
    %v123 = vld [vmem:[#allocation7 + $0x1c0] sm:$0xff]
    %v124 = vld [vmem:[#allocation7 + $0x1c8] sm:$0xff]
    %v125 = vld [vmem:[#allocation7 + $0x1d0] sm:$0xff]
    %v126 = vld [vmem:[#allocation7 + $0x1d8] sm:$0xff]
    %v127 = vld [vmem:[#allocation7 + $0x1e0] sm:$0xff]
    %v128 = vld [vmem:[#allocation7 + $0x1e8] sm:$0xff]
    %v129 = vld [vmem:[#allocation7 + $0x1f0] sm:$0xff]
    %v130 = vld [vmem:[#allocation7 + $0x1f8] sm:$0xff]
    %v131 = vld [vmem:[#allocation7 + $0x200] sm:$0xff]
    %v132 = vld [vmem:[#allocation7 + $0x208] sm:$0xff]
    %v133 = vld [vmem:[#allocation7 + $0x210] sm:$0xff]
    %v134 = vld [vmem:[#allocation7 + $0x218] sm:$0xff]
    %v135 = vld [vmem:[#allocation7 + $0x220] sm:$0xff]
    %v136 = vld [vmem:[#allocation7 + $0x228] sm:$0xff]
    %v137 = vld [vmem:[#allocation7 + $0x230] sm:$0xff]
    %v138 = vld [vmem:[#allocation7 + $0x238] sm:$0xff]
    %v139 = vld [vmem:[#allocation7 + $0x240] sm:$0xff]
    %v140 = vld [vmem:[#allocation7 + $0x248] sm:$0xff]
    %v141 = vld [vmem:[#allocation7 + $0x250] sm:$0xff]
    %v142 = vld [vmem:[#allocation7 + $0x258] sm:$0xff]
    %v143 = vld [vmem:[#allocation7 + $0x260] sm:$0xff]
    %v144 = vld [vmem:[#allocation7 + $0x268] sm:$0xff]
    %v145 = vld [vmem:[#allocation7 + $0x270] sm:$0xff]
    %v146 = vld [vmem:[#allocation7 + $0x278] sm:$0xff]
    %v147 = vld [vmem:[#allocation7 + $0x280] sm:$0xff]
    %v148 = vld [vmem:[#allocation7 + $0x288] sm:$0xff]
    %v149 = vld [vmem:[#allocation7 + $0x290] sm:$0xff]
    %v150 = vld [vmem:[#allocation7 + $0x298] sm:$0xff]
    %v151 = vld [vmem:[#allocation7 + $0x2a0] sm:$0xff]
    %v152 = vld [vmem:[#allocation7 + $0x2a8] sm:$0xff]
    %v153 = vld [vmem:[#allocation7 + $0x2b0] sm:$0xff]
    %v154 = vld [vmem:[#allocation7 + $0x2b8] sm:$0xff]
    %v155 = vld [vmem:[#allocation7 + $0x2c0] sm:$0xff]
    %v156 = vld [vmem:[#allocation7 + $0x2c8] sm:$0xff]
    %v157 = vld [vmem:[#allocation7 + $0x2d0] sm:$0xff]
    %v158 = vld [vmem:[#allocation7 + $0x2d8] sm:$0xff]
    %v159 = vld [vmem:[#allocation7 + $0x2e0] sm:$0xff]
    %v160 = vld [vmem:[#allocation7 + $0x2e8] sm:$0xff]
    %v161 = vld [vmem:[#allocation7 + $0x2f0] sm:$0xff]
    %v162 = vld [vmem:[#allocation7 + $0x2f8] sm:$0xff]
    %v163 = vld [vmem:[#allocation7 + $0x300] sm:$0xff]
    %v164 = vld [vmem:[#allocation7 + $0x308] sm:$0xff]
    %v165 = vld [vmem:[#allocation7 + $0x310] sm:$0xff]
    %v166 = vld [vmem:[#allocation7 + $0x318] sm:$0xff]
    %v167 = vld [vmem:[#allocation7 + $0x320] sm:$0xff]
    %v168 = vld [vmem:[#allocation7 + $0x328] sm:$0xff]
    %v169 = vld [vmem:[#allocation7 + $0x330] sm:$0xff]
    %v170 = vld [vmem:[#allocation7 + $0x338] sm:$0xff]
    %v171 = vld [vmem:[#allocation7 + $0x340] sm:$0xff]
    %v172 = vld [vmem:[#allocation7 + $0x348] sm:$0xff]
    %v173 = vld [vmem:[#allocation7 + $0x350] sm:$0xff]
    %v174 = vld [vmem:[#allocation7 + $0x358] sm:$0xff]
    %v175 = vld [vmem:[#allocation7 + $0x360] sm:$0xff]
    %v176 = vld [vmem:[#allocation7 + $0x368] sm:$0xff]
    %v177 = vld [vmem:[#allocation7 + $0x370] sm:$0xff]
    %v178 = vld [vmem:[#allocation7 + $0x378] sm:$0xff]
    %v179 = vld [vmem:[#allocation7 + $0x380] sm:$0xff]
    %v180 = vld [vmem:[#allocation7 + $0x388] sm:$0xff]
    %v181 = vld [vmem:[#allocation7 + $0x390] sm:$0xff]
    %v182 = vld [vmem:[#allocation7 + $0x398] sm:$0xff]
    %v183 = vld [vmem:[#allocation7 + $0x3a0] sm:$0xff]
    %v184 = vld [vmem:[#allocation7 + $0x3a8] sm:$0xff]
    %v185 = vld [vmem:[#allocation7 + $0x3b0] sm:$0xff]
    %v186 = vld [vmem:[#allocation7 + $0x3b8] sm:$0xff]
    %v187 = vld [vmem:[#allocation7 + $0x3c0] sm:$0xff]
    %v188 = vld [vmem:[#allocation7 + $0x3c8] sm:$0xff]
    %v189 = vld [vmem:[#allocation7 + $0x3d0] sm:$0xff]
    %v190 = vld [vmem:[#allocation7 + $0x3d8] sm:$0xff]
    %v191 = vld [vmem:[#allocation7 + $0x3e0] sm:$0xff]
    %v192 = vld [vmem:[#allocation7 + $0x3e8] sm:$0xff]
    %v193 = vld [vmem:[#allocation7 + $0x3f0] sm:$0xff]
    %v194 = vld [vmem:[#allocation7 + $0x3f8] sm:$0xff]
    %v195 = vld [vmem:[#allocation7 + $0x400] sm:$0xff]
    %v196 = vld [vmem:[#allocation7 + $0x408] sm:$0xff]
    %v197 = vld [vmem:[#allocation7 + $0x410] sm:$0xff]
    %v198 = vld [vmem:[#allocation7 + $0x418] sm:$0xff]
    %v199 = vld [vmem:[#allocation7 + $0x420] sm:$0xff]
    %v200 = vld [vmem:[#allocation7 + $0x428] sm:$0xff]
    %v201 = vld [vmem:[#allocation7 + $0x430] sm:$0xff]
    %v202 = vld [vmem:[#allocation7 + $0x438] sm:$0xff]
    %v203 = vld [vmem:[#allocation7 + $0x440] sm:$0xff]
    %v204 = vld [vmem:[#allocation7 + $0x448] sm:$0xff]
    %v205 = vld [vmem:[#allocation7 + $0x450] sm:$0xff]
    %v206 = vld [vmem:[#allocation7 + $0x458] sm:$0xff]
    %v207 = vld [vmem:[#allocation7 + $0x460] sm:$0xff]
    %v208 = vld [vmem:[#allocation7 + $0x468] sm:$0xff]
    %v209 = vld [vmem:[#allocation7 + $0x470] sm:$0xff]
    %v210 = vld [vmem:[#allocation7 + $0x478] sm:$0xff]
    %v211 = vld [vmem:[#allocation7 + $0x480] sm:$0xff]
    %v212 = vld [vmem:[#allocation7 + $0x488] sm:$0xff]
    %v213 = vld [vmem:[#allocation7 + $0x490] sm:$0xff]
    %v214 = vld [vmem:[#allocation7 + $0x498] sm:$0xff]
    %v215 = vld [vmem:[#allocation7 + $0x4a0] sm:$0xff]
    %v216 = vld [vmem:[#allocation7 + $0x4a8] sm:$0xff]
    %v217 = vld [vmem:[#allocation7 + $0x4b0] sm:$0xff]
    %v218 = vld [vmem:[#allocation7 + $0x4b8] sm:$0xff]
    %v219 = vld [vmem:[#allocation7 + $0x4c0] sm:$0xff]
    %v220 = vld [vmem:[#allocation7 + $0x4c8] sm:$0xff]
    %v221 = vld [vmem:[#allocation7 + $0x4d0] sm:$0xff]
    %v222 = vld [vmem:[#allocation7 + $0x4d8] sm:$0xff]
    %v223 = vld [vmem:[#allocation7 + $0x4e0] sm:$0xff]
    %v224 = vld [vmem:[#allocation7 + $0x4e8] sm:$0xff]
    %v225 = vld [vmem:[#allocation7 + $0x4f0] sm:$0xff]
    %v226 = vld [vmem:[#allocation7 + $0x4f8] sm:$0xff]
    %v227 = vld [vmem:[#allocation7 + $0x500] sm:$0xff]
    %v228 = vld [vmem:[#allocation7 + $0x508] sm:$0xff]
    %v229 = vld [vmem:[#allocation7 + $0x510] sm:$0xff]
    %v230 = vld [vmem:[#allocation7 + $0x518] sm:$0xff]
    %v231 = vld [vmem:[#allocation7 + $0x520] sm:$0xff]
    %v232 = vld [vmem:[#allocation7 + $0x528] sm:$0xff]
    %v233 = vld [vmem:[#allocation7 + $0x530] sm:$0xff]
    %v234 = vld [vmem:[#allocation7 + $0x538] sm:$0xff]
    %v235 = vld [vmem:[#allocation7 + $0x540] sm:$0xff]
    %v236 = vld [vmem:[#allocation7 + $0x548] sm:$0xff]
    %v237 = vld [vmem:[#allocation7 + $0x550] sm:$0xff]
    %v238 = vld [vmem:[#allocation7 + $0x558] sm:$0xff]
    %v239 = vld [vmem:[#allocation7 + $0x560] sm:$0xff]
    %v240 = vld [vmem:[#allocation7 + $0x568] sm:$0xff]
    %v241 = vld [vmem:[#allocation7 + $0x570] sm:$0xff]
    %v242 = vld [vmem:[#allocation7 + $0x578] sm:$0xff]
    %v243 = vld [vmem:[#allocation7 + $0x580] sm:$0xff]
    %v244 = vld [vmem:[#allocation7 + $0x588] sm:$0xff]
    %v245 = vld [vmem:[#allocation7 + $0x590] sm:$0xff]
    %v246 = vld [vmem:[#allocation7 + $0x598] sm:$0xff]
    %v247 = vld [vmem:[#allocation7 + $0x5a0] sm:$0xff]
    %v248 = vld [vmem:[#allocation7 + $0x5a8] sm:$0xff]
    %v249 = vld [vmem:[#allocation7 + $0x5b0] sm:$0xff]
    %v250 = vld [vmem:[#allocation7 + $0x5b8] sm:$0xff]
    %v251 = vld [vmem:[#allocation7 + $0x5c0] sm:$0xff]
    %v252 = vld [vmem:[#allocation7 + $0x5c8] sm:$0xff]
    %v253 = vld [vmem:[#allocation7 + $0x5d0] sm:$0xff]
    %v254 = vld [vmem:[#allocation7 + $0x5d8] sm:$0xff]
    %v255 = vld [vmem:[#allocation7 + $0x5e0] sm:$0xff]
    %v256 = vld [vmem:[#allocation7 + $0x5e8] sm:$0xff]
    %v257 = vld [vmem:[#allocation7 + $0x5f0] sm:$0xff]
    %v258 = vld [vmem:[#allocation7 + $0x5f8] sm:$0xff]
    %v259 = vld [vmem:[#allocation7 + $0x600] sm:$0xff]
    %v260 = vld [vmem:[#allocation7 + $0x608] sm:$0xff]
    %v261 = vld [vmem:[#allocation7 + $0x610] sm:$0xff]
    %v262 = vld [vmem:[#allocation7 + $0x618] sm:$0xff]
    %v263 = vld [vmem:[#allocation7 + $0x620] sm:$0xff]
    %v264 = vld [vmem:[#allocation7 + $0x628] sm:$0xff]
    %v265 = vld [vmem:[#allocation7 + $0x630] sm:$0xff]
    %v266 = vld [vmem:[#allocation7 + $0x638] sm:$0xff]
    %v267 = vld [vmem:[#allocation7 + $0x640] sm:$0xff]
    %v268 = vld [vmem:[#allocation7 + $0x648] sm:$0xff]
    %v269 = vld [vmem:[#allocation7 + $0x650] sm:$0xff]
    %v270 = vld [vmem:[#allocation7 + $0x658] sm:$0xff]
    %v271 = vld [vmem:[#allocation7 + $0x660] sm:$0xff]
    %v272 = vld [vmem:[#allocation7 + $0x668] sm:$0xff]
    %v273 = vld [vmem:[#allocation7 + $0x670] sm:$0xff]
    %v274 = vld [vmem:[#allocation7 + $0x678] sm:$0xff]
    %v275 = vld [vmem:[#allocation7 + $0x680] sm:$0xff]
    %v276 = vld [vmem:[#allocation7 + $0x688] sm:$0xff]
    %v277 = vld [vmem:[#allocation7 + $0x690] sm:$0xff]
    %v278 = vld [vmem:[#allocation7 + $0x698] sm:$0xff]
    %v279 = vld [vmem:[#allocation7 + $0x6a0] sm:$0xff]
    %v280 = vld [vmem:[#allocation7 + $0x6a8] sm:$0xff]
    %v281 = vld [vmem:[#allocation7 + $0x6b0] sm:$0xff]
    %v282 = vld [vmem:[#allocation7 + $0x6b8] sm:$0xff]
    %v283 = vld [vmem:[#allocation7 + $0x6c0] sm:$0xff]
    %v284 = vld [vmem:[#allocation7 + $0x6c8] sm:$0xff]
    %v285 = vld [vmem:[#allocation7 + $0x6d0] sm:$0xff]
    %v286 = vld [vmem:[#allocation7 + $0x6d8] sm:$0xff]
    %v287 = vld [vmem:[#allocation7 + $0x6e0] sm:$0xff]
    %v288 = vld [vmem:[#allocation7 + $0x6e8] sm:$0xff]
    %v289 = vld [vmem:[#allocation7 + $0x6f0] sm:$0xff]
    %v290 = vld [vmem:[#allocation7 + $0x6f8] sm:$0xff]
    %v291 = vld [vmem:[#allocation7 + $0x700] sm:$0xff]
    %v292 = vld [vmem:[#allocation7 + $0x708] sm:$0xff]
    %v293 = vld [vmem:[#allocation7 + $0x710] sm:$0xff]
    %v294 = vld [vmem:[#allocation7 + $0x718] sm:$0xff]
    %v295 = vld [vmem:[#allocation7 + $0x720] sm:$0xff]
    %v296 = vld [vmem:[#allocation7 + $0x728] sm:$0xff]
    %v297 = vld [vmem:[#allocation7 + $0x730] sm:$0xff]
    %v298 = vld [vmem:[#allocation7 + $0x738] sm:$0xff]
    %v299 = vld [vmem:[#allocation7 + $0x740] sm:$0xff]
    %v300 = vld [vmem:[#allocation7 + $0x748] sm:$0xff]
    %v301 = vld [vmem:[#allocation7 + $0x750] sm:$0xff]
    %v302 = vld [vmem:[#allocation7 + $0x758] sm:$0xff]
    %v303 = vld [vmem:[#allocation7 + $0x760] sm:$0xff]
    %v304 = vld [vmem:[#allocation7 + $0x768] sm:$0xff]
    %v305 = vld [vmem:[#allocation7 + $0x770] sm:$0xff]
    %v306 = vld [vmem:[#allocation7 + $0x778] sm:$0xff]
    %v307 = vld [vmem:[#allocation7 + $0x780] sm:$0xff]
    %v308 = vld [vmem:[#allocation7 + $0x788] sm:$0xff]
    %v309 = vld [vmem:[#allocation7 + $0x790] sm:$0xff]
    %v310 = vld [vmem:[#allocation7 + $0x798] sm:$0xff]
    %v311 = vld [vmem:[#allocation7 + $0x7a0] sm:$0xff]
    %v312 = vld [vmem:[#allocation7 + $0x7a8] sm:$0xff]
    %v313 = vld [vmem:[#allocation7 + $0x7b0] sm:$0xff]
    %v314 = vld [vmem:[#allocation7 + $0x7b8] sm:$0xff]
    %v315 = vld [vmem:[#allocation7 + $0x7c0] sm:$0xff]
    %v316 = vld [vmem:[#allocation7 + $0x7c8] sm:$0xff]
    %v317 = vld [vmem:[#allocation7 + $0x7d0] sm:$0xff]
    %v318 = vld [vmem:[#allocation7 + $0x7d8] sm:$0xff]
    %v319 = vld [vmem:[#allocation7 + $0x7e0] sm:$0xff]
    %v320 = vld [vmem:[#allocation7 + $0x7e8] sm:$0xff]
    %v321 = vld [vmem:[#allocation7 + $0x7f0] sm:$0xff]
    %v322 = vld [vmem:[#allocation7 + $0x7f8] sm:$0xff]
    %v323 = vld [vmem:[#allocation7 + $0x800] sm:$0xff]
    %v324 = vld [vmem:[#allocation7 + $0x808] sm:$0xff]
    %v325 = vld [vmem:[#allocation7 + $0x810] sm:$0xff]
    %v326 = vld [vmem:[#allocation7 + $0x818] sm:$0xff]
    %v327 = vld [vmem:[#allocation7 + $0x820] sm:$0xff]
    %v328 = vld [vmem:[#allocation7 + $0x828] sm:$0xff]
    %v329 = vld [vmem:[#allocation7 + $0x830] sm:$0xff]
    %v330 = vld [vmem:[#allocation7 + $0x838] sm:$0xff]
    %v331 = vld [vmem:[#allocation7 + $0x840] sm:$0xff]
    %v332 = vld [vmem:[#allocation7 + $0x848] sm:$0xff]
    %v333 = vld [vmem:[#allocation7 + $0x850] sm:$0xff]
    %v334 = vld [vmem:[#allocation7 + $0x858] sm:$0xff]
    %v335 = vld [vmem:[#allocation7 + $0x860] sm:$0xff]
    %v336 = vld [vmem:[#allocation7 + $0x868] sm:$0xff]
    %v337 = vld [vmem:[#allocation7 + $0x870] sm:$0xff]
    %v338 = vld [vmem:[#allocation7 + $0x878] sm:$0xff]
    %v339 = vld [vmem:[#allocation7 + $0x880] sm:$0xff]
    %v340 = vld [vmem:[#allocation7 + $0x888] sm:$0xff]
    %v341 = vld [vmem:[#allocation7 + $0x890] sm:$0xff]
    %v342 = vld [vmem:[#allocation7 + $0x898] sm:$0xff]
    %v343 = vld [vmem:[#allocation7 + $0x8a0] sm:$0xff]
    %v344 = vld [vmem:[#allocation7 + $0x8a8] sm:$0xff]
    %v345 = vld [vmem:[#allocation7 + $0x8b0] sm:$0xff]
    %v346 = vld [vmem:[#allocation7 + $0x8b8] sm:$0xff]
    %v347 = vld [vmem:[#allocation7 + $0x8c0] sm:$0xff]
    %v348 = vld [vmem:[#allocation7 + $0x8c8] sm:$0xff]
    %v349 = vld [vmem:[#allocation7 + $0x8d0] sm:$0xff]
    %v350 = vld [vmem:[#allocation7 + $0x8d8] sm:$0xff]
    %v351 = vld [vmem:[#allocation7 + $0x8e0] sm:$0xff]
    %v352 = vld [vmem:[#allocation7 + $0x8e8] sm:$0xff]
    %v353 = vld [vmem:[#allocation7 + $0x8f0] sm:$0xff]
    %v354 = vld [vmem:[#allocation7 + $0x8f8] sm:$0xff]
    %v355 = vld [vmem:[#allocation7 + $0x900] sm:$0xff]
    %v356 = vld [vmem:[#allocation7 + $0x908] sm:$0xff]
    %v357 = vld [vmem:[#allocation7 + $0x910] sm:$0xff]
    %v358 = vld [vmem:[#allocation7 + $0x918] sm:$0xff]
    %v359 = vld [vmem:[#allocation7 + $0x920] sm:$0xff]
    %v360 = vld [vmem:[#allocation7 + $0x928] sm:$0xff]
    %v361 = vld [vmem:[#allocation7 + $0x930] sm:$0xff]
    %v362 = vld [vmem:[#allocation7 + $0x938] sm:$0xff]
    %v363 = vld [vmem:[#allocation7 + $0x940] sm:$0xff]
    %v364 = vld [vmem:[#allocation7 + $0x948] sm:$0xff]
    %v365 = vld [vmem:[#allocation7 + $0x950] sm:$0xff]
    %v366 = vld [vmem:[#allocation7 + $0x958] sm:$0xff]
    %v367 = vld [vmem:[#allocation7 + $0x960] sm:$0xff]
    %v368 = vld [vmem:[#allocation7 + $0x968] sm:$0xff]
    %v369 = vld [vmem:[#allocation7 + $0x970] sm:$0xff]
    %v370 = vld [vmem:[#allocation7 + $0x978] sm:$0xff]
    %v371 = vld [vmem:[#allocation7 + $0x980] sm:$0xff]
    %v372 = vld [vmem:[#allocation7 + $0x988] sm:$0xff]
    %v373 = vld [vmem:[#allocation7 + $0x990] sm:$0xff]
    %v374 = vld [vmem:[#allocation7 + $0x998] sm:$0xff]
    %v375 = vld [vmem:[#allocation7 + $0x9a0] sm:$0xff]
    %v376 = vld [vmem:[#allocation7 + $0x9a8] sm:$0xff]
    %v377 = vld [vmem:[#allocation7 + $0x9b0] sm:$0xff]
    %v378 = vld [vmem:[#allocation7 + $0x9b8] sm:$0xff]
    %v379 = vld [vmem:[#allocation7 + $0x9c0] sm:$0xff]
    %v380 = vld [vmem:[#allocation7 + $0x9c8] sm:$0xff]
    %v381 = vld [vmem:[#allocation7 + $0x9d0] sm:$0xff]
    %v382 = vld [vmem:[#allocation7 + $0x9d8] sm:$0xff]
    %v383 = vld [vmem:[#allocation7 + $0x9e0] sm:$0xff]
    %v384 = vld [vmem:[#allocation7 + $0x9e8] sm:$0xff]
    %v385 = vld [vmem:[#allocation7 + $0x9f0] sm:$0xff]
    %v386 = vld [vmem:[#allocation7 + $0x9f8] sm:$0xff]
    %v387 = vld [vmem:[#allocation7 + $0xa00] sm:$0xff]
    %v388 = vld [vmem:[#allocation7 + $0xa08] sm:$0xff]
    %v389 = vld [vmem:[#allocation7 + $0xa10] sm:$0xff]
    %v390 = vld [vmem:[#allocation7 + $0xa18] sm:$0xff]
    %v391 = vld [vmem:[#allocation7 + $0xa20] sm:$0xff]
    %v392 = vld [vmem:[#allocation7 + $0xa28] sm:$0xff]
    %v393 = vld [vmem:[#allocation7 + $0xa30] sm:$0xff]
    %v394 = vld [vmem:[#allocation7 + $0xa38] sm:$0xff]
    %v395 = vld [vmem:[#allocation7 + $0xa40] sm:$0xff]
    %v396 = vld [vmem:[#allocation7 + $0xa48] sm:$0xff]
    %v397 = vld [vmem:[#allocation7 + $0xa50] sm:$0xff]
    %v398 = vld [vmem:[#allocation7 + $0xa58] sm:$0xff]
    %v399 = vld [vmem:[#allocation7 + $0xa60] sm:$0xff]
    %v400 = vld [vmem:[#allocation7 + $0xa68] sm:$0xff]
    %v401 = vld [vmem:[#allocation7 + $0xa70] sm:$0xff]
    %v402 = vld [vmem:[#allocation7 + $0xa78] sm:$0xff]
    %v403 = vld [vmem:[#allocation7 + $0xa80] sm:$0xff]
    %v404 = vld [vmem:[#allocation7 + $0xa88] sm:$0xff]
    %v405 = vld [vmem:[#allocation7 + $0xa90] sm:$0xff]
    %v406 = vld [vmem:[#allocation7 + $0xa98] sm:$0xff]
    %v407 = vld [vmem:[#allocation7 + $0xaa0] sm:$0xff]
    %v408 = vld [vmem:[#allocation7 + $0xaa8] sm:$0xff]
    %v409 = vld [vmem:[#allocation7 + $0xab0] sm:$0xff]
    %v410 = vld [vmem:[#allocation7 + $0xab8] sm:$0xff]
    %v411 = vld [vmem:[#allocation7 + $0xac0] sm:$0xff]
    %v412 = vld [vmem:[#allocation7 + $0xac8] sm:$0xff]
    %v413 = vld [vmem:[#allocation7 + $0xad0] sm:$0xff]
    %v414 = vld [vmem:[#allocation7 + $0xad8] sm:$0xff]
    %v415 = vld [vmem:[#allocation7 + $0xae0] sm:$0xff]
    %v416 = vld [vmem:[#allocation7 + $0xae8] sm:$0xff]
    %v417 = vld [vmem:[#allocation7 + $0xaf0] sm:$0xff]
    %v418 = vld [vmem:[#allocation7 + $0xaf8] sm:$0xff]
    %v419 = vld [vmem:[#allocation7 + $0xb00] sm:$0xff]
    %v420 = vld [vmem:[#allocation7 + $0xb08] sm:$0xff]
    %v421 = vld [vmem:[#allocation7 + $0xb10] sm:$0xff]
    %v422 = vld [vmem:[#allocation7 + $0xb18] sm:$0xff]
    %v423 = vld [vmem:[#allocation7 + $0xb20] sm:$0xff]
    %v424 = vld [vmem:[#allocation7 + $0xb28] sm:$0xff]
    %v425 = vld [vmem:[#allocation7 + $0xb30] sm:$0xff]
    %v426 = vld [vmem:[#allocation7 + $0xb38] sm:$0xff]
    %v427 = vld [vmem:[#allocation7 + $0xb40] sm:$0xff]
    %v428 = vld [vmem:[#allocation7 + $0xb48] sm:$0xff]
    %v429 = vld [vmem:[#allocation7 + $0xb50] sm:$0xff]
    %v430 = vld [vmem:[#allocation7 + $0xb58] sm:$0xff]
    %v431 = vld [vmem:[#allocation7 + $0xb60] sm:$0xff]
    %v432 = vld [vmem:[#allocation7 + $0xb68] sm:$0xff]
    %v433 = vld [vmem:[#allocation7 + $0xb70] sm:$0xff]
    %v434 = vld [vmem:[#allocation7 + $0xb78] sm:$0xff]
    %v435 = vld [vmem:[#allocation7 + $0xb80] sm:$0xff]
    %v436 = vld [vmem:[#allocation7 + $0xb88] sm:$0xff]
    %v437 = vld [vmem:[#allocation7 + $0xb90] sm:$0xff]
    %v438 = vld [vmem:[#allocation7 + $0xb98] sm:$0xff]
    %v439 = vld [vmem:[#allocation7 + $0xba0] sm:$0xff]
    %v440 = vld [vmem:[#allocation7 + $0xba8] sm:$0xff]
    %v441 = vld [vmem:[#allocation7 + $0xbb0] sm:$0xff]
    %v442 = vld [vmem:[#allocation7 + $0xbb8] sm:$0xff]
    %v443 = vld [vmem:[#allocation7 + $0xbc0] sm:$0xff]
    %v444 = vld [vmem:[#allocation7 + $0xbc8] sm:$0xff]
    %v445 = vld [vmem:[#allocation7 + $0xbd0] sm:$0xff]
    %v446 = vld [vmem:[#allocation7 + $0xbd8] sm:$0xff]
    %v447 = vld [vmem:[#allocation7 + $0xbe0] sm:$0xff]
    %v448 = vld [vmem:[#allocation7 + $0xbe8] sm:$0xff]
    %v449 = vld [vmem:[#allocation7 + $0xbf0] sm:$0xff]
    %v450 = vld [vmem:[#allocation7 + $0xbf8] sm:$0xff]
    %v451 = vld [vmem:[#allocation7 + $0xc00] sm:$0xff]
    %v452 = vld [vmem:[#allocation7 + $0xc08] sm:$0xff]
    %v453 = vld [vmem:[#allocation7 + $0xc10] sm:$0xff]
    %v454 = vld [vmem:[#allocation7 + $0xc18] sm:$0xff]
    %v455 = vld [vmem:[#allocation7 + $0xc20] sm:$0xff]
    %v456 = vld [vmem:[#allocation7 + $0xc28] sm:$0xff]
    %v457 = vld [vmem:[#allocation7 + $0xc30] sm:$0xff]
    %v458 = vld [vmem:[#allocation7 + $0xc38] sm:$0xff]
    %v459 = vld [vmem:[#allocation7 + $0xc40] sm:$0xff]
    %v460 = vld [vmem:[#allocation7 + $0xc48] sm:$0xff]
    %v461 = vld [vmem:[#allocation7 + $0xc50] sm:$0xff]
    %v462 = vld [vmem:[#allocation7 + $0xc58] sm:$0xff]
    %v463 = vld [vmem:[#allocation7 + $0xc60] sm:$0xff]
    %v464 = vld [vmem:[#allocation7 + $0xc68] sm:$0xff]
    %v465 = vld [vmem:[#allocation7 + $0xc70] sm:$0xff]
    %v466 = vld [vmem:[#allocation7 + $0xc78] sm:$0xff]
    %v467 = vld [vmem:[#allocation7 + $0xc80] sm:$0xff]
    %v468 = vld [vmem:[#allocation7 + $0xc88] sm:$0xff]
    %v469 = vld [vmem:[#allocation7 + $0xc90] sm:$0xff]
    %v470 = vld [vmem:[#allocation7 + $0xc98] sm:$0xff]
    %v471 = vld [vmem:[#allocation7 + $0xca0] sm:$0xff]
    %v472 = vld [vmem:[#allocation7 + $0xca8] sm:$0xff]
    %v473 = vld [vmem:[#allocation7 + $0xcb0] sm:$0xff]
    %v474 = vld [vmem:[#allocation7 + $0xcb8] sm:$0xff]
    %v475 = vld [vmem:[#allocation7 + $0xcc0] sm:$0xff]
    %v476 = vld [vmem:[#allocation7 + $0xcc8] sm:$0xff]
    %v477 = vld [vmem:[#allocation7 + $0xcd0] sm:$0xff]
    %v478 = vld [vmem:[#allocation7 + $0xcd8] sm:$0xff]
    %v479 = vld [vmem:[#allocation7 + $0xce0] sm:$0xff]
    %v480 = vld [vmem:[#allocation7 + $0xce8] sm:$0xff]
    %v481 = vld [vmem:[#allocation7 + $0xcf0] sm:$0xff]
    %v482 = vld [vmem:[#allocation7 + $0xcf8] sm:$0xff]
    %v483 = vld [vmem:[#allocation7 + $0xd00] sm:$0xff]
    %v484 = vld [vmem:[#allocation7 + $0xd08] sm:$0xff]
    %v485 = vld [vmem:[#allocation7 + $0xd10] sm:$0xff]
    %v486 = vld [vmem:[#allocation7 + $0xd18] sm:$0xff]
    %v487 = vld [vmem:[#allocation7 + $0xd20] sm:$0xff]
    %v488 = vld [vmem:[#allocation7 + $0xd28] sm:$0xff]
    %v489 = vld [vmem:[#allocation7 + $0xd30] sm:$0xff]
    %v490 = vld [vmem:[#allocation7 + $0xd38] sm:$0xff]
    %v491 = vld [vmem:[#allocation7 + $0xd40] sm:$0xff]
    %v492 = vld [vmem:[#allocation7 + $0xd48] sm:$0xff]
    %v493 = vld [vmem:[#allocation7 + $0xd50] sm:$0xff]
    %v494 = vld [vmem:[#allocation7 + $0xd58] sm:$0xff]
    %v495 = vld [vmem:[#allocation7 + $0xd60] sm:$0xff]
    %v496 = vld [vmem:[#allocation7 + $0xd68] sm:$0xff]
    %v497 = vld [vmem:[#allocation7 + $0xd70] sm:$0xff]
    %v498 = vld [vmem:[#allocation7 + $0xd78] sm:$0xff]
    %v499 = vld [vmem:[#allocation7 + $0xd80] sm:$0xff]
    %v500 = vld [vmem:[#allocation7 + $0xd88] sm:$0xff]
    %v501 = vld [vmem:[#allocation7 + $0xd90] sm:$0xff]
    %v502 = vld [vmem:[#allocation7 + $0xd98] sm:$0xff]
    %v503 = vld [vmem:[#allocation7 + $0xda0] sm:$0xff]
    %v504 = vld [vmem:[#allocation7 + $0xda8] sm:$0xff]
    %v505 = vld [vmem:[#allocation7 + $0xdb0] sm:$0xff]
    %v506 = vld [vmem:[#allocation7 + $0xdb8] sm:$0xff]
    %v507 = vld [vmem:[#allocation7 + $0xdc0] sm:$0xff]
    %v508 = vld [vmem:[#allocation7 + $0xdc8] sm:$0xff]
    %v509 = vld [vmem:[#allocation7 + $0xdd0] sm:$0xff]
    %v510 = vld [vmem:[#allocation7 + $0xdd8] sm:$0xff]
    %v511 = vld [vmem:[#allocation7 + $0xde0] sm:$0xff]
    %v512 = vld [vmem:[#allocation7 + $0xde8] sm:$0xff]
    %v513 = vld [vmem:[#allocation7 + $0xdf0] sm:$0xff]
    %v514 = vld [vmem:[#allocation7 + $0xdf8] sm:$0xff]
    %v515 = vld [vmem:[#allocation7 + $0xe00] sm:$0xff]
    %v516 = vld [vmem:[#allocation7 + $0xe08] sm:$0xff]
    %v517 = vld [vmem:[#allocation7 + $0xe10] sm:$0xff]
    %v518 = vld [vmem:[#allocation7 + $0xe18] sm:$0xff]
    %v519 = vld [vmem:[#allocation7 + $0xe20] sm:$0xff]
    %v520 = vld [vmem:[#allocation7 + $0xe28] sm:$0xff]
    %v521 = vld [vmem:[#allocation7 + $0xe30] sm:$0xff]
    %v522 = vld [vmem:[#allocation7 + $0xe38] sm:$0xff]
    %v523 = vld [vmem:[#allocation7 + $0xe40] sm:$0xff]
    %v524 = vld [vmem:[#allocation7 + $0xe48] sm:$0xff]
    %v525 = vld [vmem:[#allocation7 + $0xe50] sm:$0xff]
    %v526 = vld [vmem:[#allocation7 + $0xe58] sm:$0xff]
    %v527 = vld [vmem:[#allocation7 + $0xe60] sm:$0xff]
    %v528 = vld [vmem:[#allocation7 + $0xe68] sm:$0xff]
    %v529 = vld [vmem:[#allocation7 + $0xe70] sm:$0xff]
    %v530 = vld [vmem:[#allocation7 + $0xe78] sm:$0xff]
    %v531 = vld [vmem:[#allocation7 + $0xe80] sm:$0xff]
    %v532 = vld [vmem:[#allocation7 + $0xe88] sm:$0xff]
    %v533 = vld [vmem:[#allocation7 + $0xe90] sm:$0xff]
    %v534 = vld [vmem:[#allocation7 + $0xe98] sm:$0xff]
    %v535 = vld [vmem:[#allocation7 + $0xea0] sm:$0xff]
    %v536 = vld [vmem:[#allocation7 + $0xea8] sm:$0xff]
    %v537 = vld [vmem:[#allocation7 + $0xeb0] sm:$0xff]
    %v538 = vld [vmem:[#allocation7 + $0xeb8] sm:$0xff]
    %v539 = vld [vmem:[#allocation7 + $0xec0] sm:$0xff]
    %v540 = vld [vmem:[#allocation7 + $0xec8] sm:$0xff]
    %v541 = vld [vmem:[#allocation7 + $0xed0] sm:$0xff]
    %v542 = vld [vmem:[#allocation7 + $0xed8] sm:$0xff]
    %v543 = vld [vmem:[#allocation7 + $0xee0] sm:$0xff]
    %v544 = vld [vmem:[#allocation7 + $0xee8] sm:$0xff]
    %v545 = vld [vmem:[#allocation7 + $0xef0] sm:$0xff]
    %v546 = vld [vmem:[#allocation7 + $0xef8] sm:$0xff]
    %v547 = vld [vmem:[#allocation7 + $0xf00] sm:$0xff]
    %v548 = vld [vmem:[#allocation7 + $0xf08] sm:$0xff]
    %v549 = vld [vmem:[#allocation7 + $0xf10] sm:$0xff]
    %v550 = vld [vmem:[#allocation7 + $0xf18] sm:$0xff]
    %v551 = vld [vmem:[#allocation7 + $0xf20] sm:$0xff]
    %v552 = vld [vmem:[#allocation7 + $0xf28] sm:$0xff]
    %v553 = vld [vmem:[#allocation7 + $0xf30] sm:$0xff]
    %v554 = vld [vmem:[#allocation7 + $0xf38] sm:$0xff]
    %v555 = vld [vmem:[#allocation7 + $0xf40] sm:$0xff]
    %v556 = vld [vmem:[#allocation7 + $0xf48] sm:$0xff]
    %v557 = vld [vmem:[#allocation7 + $0xf50] sm:$0xff]
    %v558 = vld [vmem:[#allocation7 + $0xf58] sm:$0xff]
    %v559 = vld [vmem:[#allocation7 + $0xf60] sm:$0xff]
    %v560 = vld [vmem:[#allocation7 + $0xf68] sm:$0xff]
    %v561 = vld [vmem:[#allocation7 + $0xf70] sm:$0xff]
    %v562 = vld [vmem:[#allocation7 + $0xf78] sm:$0xff]
    %v563 = vld [vmem:[#allocation7 + $0xf80] sm:$0xff]
    %v564 = vld [vmem:[#allocation7 + $0xf88] sm:$0xff]
    %v565 = vld [vmem:[#allocation7 + $0xf90] sm:$0xff]
    %v566 = vld [vmem:[#allocation7 + $0xf98] sm:$0xff]
    %v567 = vld [vmem:[#allocation7 + $0xfa0] sm:$0xff]
    %v568 = vld [vmem:[#allocation7 + $0xfa8] sm:$0xff]
    %v569 = vld [vmem:[#allocation7 + $0xfb0] sm:$0xff]
    %v570 = vld [vmem:[#allocation7 + $0xfb8] sm:$0xff]
    %v571 = vld [vmem:[#allocation7 + $0xfc0] sm:$0xff]
    %v572 = vld [vmem:[#allocation7 + $0xfc8] sm:$0xff]
    %v573 = vld [vmem:[#allocation7 + $0xfd0] sm:$0xff]
    %v574 = vld [vmem:[#allocation7 + $0xfd8] sm:$0xff]
    %v575 = vld [vmem:[#allocation7 + $0xfe0] sm:$0xff]
    %v576 = vld [vmem:[#allocation7 + $0xfe8] sm:$0xff]
    %v577 = vld [vmem:[#allocation7 + $0xff0] sm:$0xff]
    %v578 = vld [vmem:[#allocation7 + $0xff8] sm:$0xff]
    %v579 = vld [vmem:[#allocation7 + $0x1000] sm:$0xff]
    %v580 = vld [vmem:[#allocation7 + $0x1008] sm:$0xff]
    %v581 = vld [vmem:[#allocation7 + $0x1010] sm:$0xff]
    %v582 = vld [vmem:[#allocation7 + $0x1018] sm:$0xff]
    %v583 = vld [vmem:[#allocation7 + $0x1020] sm:$0xff]
    %v584 = vld [vmem:[#allocation7 + $0x1028] sm:$0xff]
    %v585 = vld [vmem:[#allocation7 + $0x1030] sm:$0xff]
    %v586 = vld [vmem:[#allocation7 + $0x1038] sm:$0xff]
    %v587 = vld [vmem:[#allocation7 + $0x1040] sm:$0xff]
    %v588 = vld [vmem:[#allocation7 + $0x1048] sm:$0xff]
    %v589 = vld [vmem:[#allocation7 + $0x1050] sm:$0xff]
    %v590 = vld [vmem:[#allocation7 + $0x1058] sm:$0xff]
    %v591 = vld [vmem:[#allocation7 + $0x1060] sm:$0xff]
    %v592 = vld [vmem:[#allocation7 + $0x1068] sm:$0xff]
    %v593 = vld [vmem:[#allocation7 + $0x1070] sm:$0xff]
    %v594 = vld [vmem:[#allocation7 + $0x1078] sm:$0xff]
    %v595 = vld [vmem:[#allocation7 + $0x1080] sm:$0xff]
    %v596 = vld [vmem:[#allocation7 + $0x1088] sm:$0xff]
    %v597 = vld [vmem:[#allocation7 + $0x1090] sm:$0xff]
    %v598 = vld [vmem:[#allocation7 + $0x1098] sm:$0xff]
    %v599 = vld [vmem:[#allocation7 + $0x10a0] sm:$0xff]
    %v600 = vld [vmem:[#allocation7 + $0x10a8] sm:$0xff]
    %v601 = vld [vmem:[#allocation7 + $0x10b0] sm:$0xff]
    %v602 = vld [vmem:[#allocation7 + $0x10b8] sm:$0xff]
    %v603 = vld [vmem:[#allocation7 + $0x10c0] sm:$0xff]
    %v604 = vld [vmem:[#allocation7 + $0x10c8] sm:$0xff]
    %v605 = vld [vmem:[#allocation7 + $0x10d0] sm:$0xff]
    %v606 = vld [vmem:[#allocation7 + $0x10d8] sm:$0xff]
    %v607 = vld [vmem:[#allocation7 + $0x10e0] sm:$0xff]
    %v608 = vld [vmem:[#allocation7 + $0x10e8] sm:$0xff]
    %v609 = vld [vmem:[#allocation7 + $0x10f0] sm:$0xff]
    %v610 = vld [vmem:[#allocation7 + $0x10f8] sm:$0xff]
    %v611 = vld [vmem:[#allocation7 + $0x1100] sm:$0xff]
    %v612 = vld [vmem:[#allocation7 + $0x1108] sm:$0xff]
    %v613 = vld [vmem:[#allocation7 + $0x1110] sm:$0xff]
    %v614 = vld [vmem:[#allocation7 + $0x1118] sm:$0xff]
    %v615 = vld [vmem:[#allocation7 + $0x1120] sm:$0xff]
    %v616 = vld [vmem:[#allocation7 + $0x1128] sm:$0xff]
    %v617 = vld [vmem:[#allocation7 + $0x1130] sm:$0xff]
    %v618 = vld [vmem:[#allocation7 + $0x1138] sm:$0xff]
    %v619 = vld [vmem:[#allocation7 + $0x1140] sm:$0xff]
    %v620 = vld [vmem:[#allocation7 + $0x1148] sm:$0xff]
    %v621 = vld [vmem:[#allocation7 + $0x1150] sm:$0xff]
    %v622 = vld [vmem:[#allocation7 + $0x1158] sm:$0xff]
    %v623 = vld [vmem:[#allocation7 + $0x1160] sm:$0xff]
    %v624 = vld [vmem:[#allocation7 + $0x1168] sm:$0xff]
    %v625 = vld [vmem:[#allocation7 + $0x1170] sm:$0xff]
    %v626 = vld [vmem:[#allocation7 + $0x1178] sm:$0xff]
    %v627 = vld [vmem:[#allocation7 + $0x1180] sm:$0xff]
    %v628 = vld [vmem:[#allocation7 + $0x1188] sm:$0xff]
    %v629 = vld [vmem:[#allocation7 + $0x1190] sm:$0xff]
    %v630 = vld [vmem:[#allocation7 + $0x1198] sm:$0xff]
    %v631 = vld [vmem:[#allocation7 + $0x11a0] sm:$0xff]
    %v632 = vld [vmem:[#allocation7 + $0x11a8] sm:$0xff]
    %v633 = vld [vmem:[#allocation7 + $0x11b0] sm:$0xff]
    %v634 = vld [vmem:[#allocation7 + $0x11b8] sm:$0xff]
    %v635 = vld [vmem:[#allocation7 + $0x11c0] sm:$0xff]
    %v636 = vld [vmem:[#allocation7 + $0x11c8] sm:$0xff]
    %v637 = vld [vmem:[#allocation7 + $0x11d0] sm:$0xff]
    %v638 = vld [vmem:[#allocation7 + $0x11d8] sm:$0xff]
    %v639 = vld [vmem:[#allocation7 + $0x11e0] sm:$0xff]
    %v640 = vld [vmem:[#allocation7 + $0x11e8] sm:$0xff]
    %v641 = vld [vmem:[#allocation7 + $0x11f0] sm:$0xff]
    %v642 = vld [vmem:[#allocation7 + $0x11f8] sm:$0xff]
    %v643 = vld [vmem:[#allocation8] sm:$0x3f]
    %v644 = vld [vmem:[#allocation2] sm:$0xff]
    %v645 = vld [vmem:[#allocation2 + $0x8] sm:$0xff]
    %v646 = vld [vmem:[#allocation2 + $0x10] sm:$0xff]
    %v647 = vld [vmem:[#allocation2 + $0x18] sm:$0xff]
    %v648 = vld [vmem:[#allocation2 + $0x20] sm:$0xff]
    %v649 = vld [vmem:[#allocation2 + $0x28] sm:$0xff]
    %v651 = vlaneseq
    %v652 = vshrl.u32 %v651, 7
    %v653 = vsub.s32 0, %v652
    %v654 = vrot.slane %v643, %v653
    %v655 = vlaneseq
    %v656 = vshrl.u32 %v655, 7
    %v657 = vsub.s32 1, %v656
    %v658 = vrot.slane %v643, %v657
    %v659 = vlaneseq
    %v660 = vshrl.u32 %v659, 7
    %v661 = vsub.s32 2, %v660
    %v662 = vrot.slane %v643, %v661
    %v663 = vlaneseq
    %v664 = vshrl.u32 %v663, 7
    %v665 = vsub.s32 3, %v664
    %v666 = vrot.slane %v643, %v665
    %v667 = vlaneseq
    %v668 = vshrl.u32 %v667, 7
    %v669 = vsub.s32 4, %v668
    %v670 = vrot.slane %v643, %v669
    %v671 = vlaneseq
    %v672 = vshrl.u32 %v671, 7
    %v673 = vsub.s32 5, %v672
    %v674 = vrot.slane %v643, %v673
    %681 = vmatprep.subr.mxu0 %v68
    %682 = vmatpush1.msra.mxu0 %v67
    %683 = vmatprep.subr.mxu0 %v74
    %684 = vmatpush1.msra.mxu0 %v73
    %685 = vmatprep.subr.mxu0 %v80
    %686 = vmatpush1.msra.mxu0 %v79
    %687 = vmatprep.subr.mxu0 %v86
    %688 = vmatpush1.msra.mxu0 %v85
    %689 = vmatprep.subr.mxu0 %v92
    %690 = vmatpush1.msra.mxu0 %v91
    %691 = vmatprep.subr.mxu0 %v98
    %692 = vmatpush1.msra.mxu0 %v97
    %693 = vmatprep.subr.mxu0 %v104
    %694 = vmatpush1.msra.mxu0 %v103
    %695 = vmatprep.subr.mxu0 %v110
    %696 = vmatpush1.msra.mxu0 %v109
    %697 = vmatprep.subr.mxu0 %v116
    %698 = vmatpush1.msra.mxu0 %v115
    %699 = vmatprep.subr.mxu0 %v122
    %700 = vmatpush1.msra.mxu0 %v121
    %701 = vmatprep.subr.mxu0 %v128
    %702 = vmatpush1.msra.mxu0 %v127
    %703 = vmatprep.subr.mxu0 %v134
    %704 = vmatpush1.msra.mxu0 %v133
    %705 = vmatprep.subr.mxu0 %v140
    %706 = vmatpush1.msra.mxu0 %v139
    %707 = vmatprep.subr.mxu0 %v146
    %708 = vmatpush1.msra.mxu0 %v145
    %709 = vmatprep.subr.mxu0 %v152
    %710 = vmatpush1.msra.mxu0 %v151
    %711 = vmatprep.subr.mxu0 %v158
    %712 = vmatpush1.msra.mxu0 %v157
    %713 = vmatprep.subr.mxu0 %v164
    %714 = vmatpush1.msra.mxu0 %v163
    %715 = vmatprep.subr.mxu0 %v170
    %716 = vmatpush1.msra.mxu0 %v169
    %717 = vmatprep.subr.mxu0 %v176
    %718 = vmatpush1.msra.mxu0 %v175
    %719 = vmatprep.subr.mxu0 %v182
    %720 = vmatpush1.msra.mxu0 %v181
    %721 = vmatprep.subr.mxu0 %v188
    %722 = vmatpush1.msra.mxu0 %v187
    %723 = vmatprep.subr.mxu0 %v194
    %724 = vmatpush1.msra.mxu0 %v193
    %725 = vmatprep.subr.mxu0 %v200
    %726 = vmatpush1.msra.mxu0 %v199
    %727 = vmatprep.subr.mxu0 %v206
    %728 = vmatpush1.msra.mxu0 %v205
    %729 = vmatprep.subr.mxu0 %v212
    %730 = vmatpush1.msra.mxu0 %v211
    %731 = vmatprep.subr.mxu0 %v218
    %732 = vmatpush1.msra.mxu0 %v217
    %733 = vmatprep.subr.mxu0 %v224
    %734 = vmatpush1.msra.mxu0 %v223
    %735 = vmatprep.subr.mxu0 %v230
    %736 = vmatpush1.msra.mxu0 %v229
    %737 = vmatprep.subr.mxu0 %v236
    %738 = vmatpush1.msra.mxu0 %v235
    %739 = vmatprep.subr.mxu0 %v242
    %740 = vmatpush1.msra.mxu0 %v241
    %741 = vmatprep.subr.mxu0 %v248
    %742 = vmatpush1.msra.mxu0 %v247
    %743 = vmatprep.subr.mxu0 %v254
    %744 = vmatpush1.msra.mxu0 %v253
    %745 = vmatprep.mubr.f32.mxu0 %v645
    %746 = vmatmul.mubr.f32.gmra.mrb[0].mxu0 %v644
    %v747 = vpop.f32.mrb[0].mxu0
    %v748 = vadd.f32 %v654, %v747
    %v749 = vpop.f32.mrb[0].mxu0
    %v750 = vadd.f32 %v658, %v749
    %751 = vdwg.mxu0
    %752 = vmatprep.subr.mxu0 %v260
    %753 = vmatpush1.msra.mxu0 %v259
    %754 = vmatprep.subr.mxu0 %v266
    %755 = vmatpush1.msra.mxu0 %v265
    %756 = vmatprep.subr.mxu0 %v272
    %757 = vmatpush1.msra.mxu0 %v271
    %758 = vmatprep.subr.mxu0 %v278
    %759 = vmatpush1.msra.mxu0 %v277
    %760 = vmatprep.subr.mxu0 %v284
    %761 = vmatpush1.msra.mxu0 %v283
    %762 = vmatprep.subr.mxu0 %v290
    %763 = vmatpush1.msra.mxu0 %v289
    %764 = vmatprep.subr.mxu0 %v296
    %765 = vmatpush1.msra.mxu0 %v295
    %766 = vmatprep.subr.mxu0 %v302
    %767 = vmatpush1.msra.mxu0 %v301
    %768 = vmatprep.subr.mxu0 %v308
    %769 = vmatpush1.msra.mxu0 %v307
    %770 = vmatprep.subr.mxu0 %v314
    %771 = vmatpush1.msra.mxu0 %v313
    %772 = vmatprep.subr.mxu0 %v320
    %773 = vmatpush1.msra.mxu0 %v319
    %774 = vmatprep.subr.mxu0 %v326
    %775 = vmatpush1.msra.mxu0 %v325
    %776 = vmatprep.subr.mxu0 %v332
    %777 = vmatpush1.msra.mxu0 %v331
    %778 = vmatprep.subr.mxu0 %v338
    %779 = vmatpush1.msra.mxu0 %v337
    %780 = vmatprep.subr.mxu0 %v344
    %781 = vmatpush1.msra.mxu0 %v343
    %782 = vmatprep.subr.mxu0 %v350
    %783 = vmatpush1.msra.mxu0 %v349
    %784 = vmatprep.subr.mxu0 %v356
    %785 = vmatpush1.msra.mxu0 %v355
    %786 = vmatprep.subr.mxu0 %v362
    %787 = vmatpush1.msra.mxu0 %v361
    %788 = vmatprep.subr.mxu0 %v368
    %789 = vmatpush1.msra.mxu0 %v367
    %790 = vmatprep.subr.mxu0 %v374
    %791 = vmatpush1.msra.mxu0 %v373
    %792 = vmatprep.subr.mxu0 %v380
    %793 = vmatpush1.msra.mxu0 %v379
    %794 = vmatprep.subr.mxu0 %v386
    %795 = vmatpush1.msra.mxu0 %v385
    %796 = vmatprep.subr.mxu0 %v392
    %797 = vmatpush1.msra.mxu0 %v391
    %798 = vmatprep.subr.mxu0 %v398
    %799 = vmatpush1.msra.mxu0 %v397
    %800 = vmatprep.subr.mxu0 %v404
    %801 = vmatpush1.msra.mxu0 %v403
    %802 = vmatprep.subr.mxu0 %v410
    %803 = vmatpush1.msra.mxu0 %v409
    %804 = vmatprep.subr.mxu0 %v416
    %805 = vmatpush1.msra.mxu0 %v415
    %806 = vmatprep.subr.mxu0 %v422
    %807 = vmatpush1.msra.mxu0 %v421
    %808 = vmatprep.subr.mxu0 %v428
    %809 = vmatpush1.msra.mxu0 %v427
    %810 = vmatprep.subr.mxu0 %v434
    %811 = vmatpush1.msra.mxu0 %v433
    %812 = vmatprep.subr.mxu0 %v440
    %813 = vmatpush1.msra.mxu0 %v439
    %814 = vmatprep.subr.mxu0 %v446
    %815 = vmatpush1.msra.mxu0 %v445
    %816 = vmatprep.mubr.f32.mxu0 %v647
    %817 = vmatmul.mubr.f32.gmra.mrb[0].mxu0 %v646
    %v818 = vpop.f32.mrb[0].mxu0
    %v819 = vadd.f32 %v748, %v818
    %v820 = vpop.f32.mrb[0].mxu0
    %v821 = vadd.f32 %v750, %v820
    %822 = vdwg.mxu0
    %823 = vmatprep.subr.mxu0 %v452
    %824 = vmatpush1.msra.mxu0 %v451
    %825 = vmatprep.subr.mxu0 %v458
    %826 = vmatpush1.msra.mxu0 %v457
    %827 = vmatprep.subr.mxu0 %v464
    %828 = vmatpush1.msra.mxu0 %v463
    %829 = vmatprep.subr.mxu0 %v470
    %830 = vmatpush1.msra.mxu0 %v469
    %831 = vmatprep.subr.mxu0 %v476
    %832 = vmatpush1.msra.mxu0 %v475
    %833 = vmatprep.subr.mxu0 %v482
    %834 = vmatpush1.msra.mxu0 %v481
    %835 = vmatprep.subr.mxu0 %v488
    %836 = vmatpush1.msra.mxu0 %v487
    %837 = vmatprep.subr.mxu0 %v494
    %838 = vmatpush1.msra.mxu0 %v493
    %839 = vmatprep.subr.mxu0 %v500
    %840 = vmatpush1.msra.mxu0 %v499
    %841 = vmatprep.subr.mxu0 %v506
    %842 = vmatpush1.msra.mxu0 %v505
    %843 = vmatprep.subr.mxu0 %v512
    %844 = vmatpush1.msra.mxu0 %v511
    %845 = vmatprep.subr.mxu0 %v518
    %846 = vmatpush1.msra.mxu0 %v517
    %847 = vmatprep.subr.mxu0 %v524
    %848 = vmatpush1.msra.mxu0 %v523
    %849 = vmatprep.subr.mxu0 %v530
    %850 = vmatpush1.msra.mxu0 %v529
    %851 = vmatprep.subr.mxu0 %v536
    %852 = vmatpush1.msra.mxu0 %v535
    %853 = vmatprep.subr.mxu0 %v542
    %854 = vmatpush1.msra.mxu0 %v541
    %855 = vmatprep.subr.mxu0 %v548
    %856 = vmatpush1.msra.mxu0 %v547
    %857 = vmatprep.subr.mxu0 %v554
    %858 = vmatpush1.msra.mxu0 %v553
    %859 = vmatprep.subr.mxu0 %v560
    %860 = vmatpush1.msra.mxu0 %v559
    %861 = vmatprep.subr.mxu0 %v566
    %862 = vmatpush1.msra.mxu0 %v565
    %863 = vmatprep.subr.mxu0 %v572
    %864 = vmatpush1.msra.mxu0 %v571
    %865 = vmatprep.subr.mxu0 %v578
    %866 = vmatpush1.msra.mxu0 %v577
    %867 = vmatprep.subr.mxu0 %v584
    %868 = vmatpush1.msra.mxu0 %v583
    %869 = vmatprep.subr.mxu0 %v590
    %870 = vmatpush1.msra.mxu0 %v589
    %871 = vmatprep.subr.mxu0 %v596
    %872 = vmatpush1.msra.mxu0 %v595
    %873 = vmatprep.subr.mxu0 %v602
    %874 = vmatpush1.msra.mxu0 %v601
    %875 = vmatprep.subr.mxu0 %v608
    %876 = vmatpush1.msra.mxu0 %v607
    %877 = vmatprep.subr.mxu0 %v614
    %878 = vmatpush1.msra.mxu0 %v613
    %879 = vmatprep.subr.mxu0 %v620
    %880 = vmatpush1.msra.mxu0 %v619
    %881 = vmatprep.subr.mxu0 %v626
    %882 = vmatpush1.msra.mxu0 %v625
    %883 = vmatprep.subr.mxu0 %v632
    %884 = vmatpush1.msra.mxu0 %v631
    %885 = vmatprep.subr.mxu0 %v638
    %886 = vmatpush1.msra.mxu0 %v637
    %887 = vmatprep.mubr.f32.mxu0 %v649
    %888 = vmatmul.mubr.f32.gmra.mrb[0].mxu0 %v648
    %v889 = vpop.f32.mrb[0].mxu0
    %v890 = vadd.f32 %v819, %v889
    %v891 = vpop.f32.mrb[0].mxu0
    %v892 = vadd.f32 %v821, %v891
    %893 = vdwg.mxu0
    %894 = vmatprep.subr.mxu0 %v70
    %895 = vmatpush1.msra.mxu0 %v69
    %896 = vmatprep.subr.mxu0 %v76
    %897 = vmatpush1.msra.mxu0 %v75
    %898 = vmatprep.subr.mxu0 %v82
    %899 = vmatpush1.msra.mxu0 %v81
    %900 = vmatprep.subr.mxu0 %v88
    %901 = vmatpush1.msra.mxu0 %v87
    %902 = vmatprep.subr.mxu0 %v94
    %903 = vmatpush1.msra.mxu0 %v93
    %904 = vmatprep.subr.mxu0 %v100
    %905 = vmatpush1.msra.mxu0 %v99
    %906 = vmatprep.subr.mxu0 %v106
    %907 = vmatpush1.msra.mxu0 %v105
    %908 = vmatprep.subr.mxu0 %v112
    %909 = vmatpush1.msra.mxu0 %v111
    %910 = vmatprep.subr.mxu0 %v118
    %911 = vmatpush1.msra.mxu0 %v117
    %912 = vmatprep.subr.mxu0 %v124
    %913 = vmatpush1.msra.mxu0 %v123
    %914 = vmatprep.subr.mxu0 %v130
    %915 = vmatpush1.msra.mxu0 %v129
    %916 = vmatprep.subr.mxu0 %v136
    %917 = vmatpush1.msra.mxu0 %v135
    %918 = vmatprep.subr.mxu0 %v142
    %919 = vmatpush1.msra.mxu0 %v141
    %920 = vmatprep.subr.mxu0 %v148
    %921 = vmatpush1.msra.mxu0 %v147
    %922 = vmatprep.subr.mxu0 %v154
    %923 = vmatpush1.msra.mxu0 %v153
    %924 = vmatprep.subr.mxu0 %v160
    %925 = vmatpush1.msra.mxu0 %v159
    %926 = vmatprep.subr.mxu0 %v166
    %927 = vmatpush1.msra.mxu0 %v165
    %928 = vmatprep.subr.mxu0 %v172
    %929 = vmatpush1.msra.mxu0 %v171
    %930 = vmatprep.subr.mxu0 %v178
    %931 = vmatpush1.msra.mxu0 %v177
    %932 = vmatprep.subr.mxu0 %v184
    %933 = vmatpush1.msra.mxu0 %v183
    %934 = vmatprep.subr.mxu0 %v190
    %935 = vmatpush1.msra.mxu0 %v189
    %936 = vmatprep.subr.mxu0 %v196
    %937 = vmatpush1.msra.mxu0 %v195
    %938 = vmatprep.subr.mxu0 %v202
    %939 = vmatpush1.msra.mxu0 %v201
    %940 = vmatprep.subr.mxu0 %v208
    %941 = vmatpush1.msra.mxu0 %v207
    %942 = vmatprep.subr.mxu0 %v214
    %943 = vmatpush1.msra.mxu0 %v213
    %944 = vmatprep.subr.mxu0 %v220
    %945 = vmatpush1.msra.mxu0 %v219
    %946 = vmatprep.subr.mxu0 %v226
    %947 = vmatpush1.msra.mxu0 %v225
    %948 = vmatprep.subr.mxu0 %v232
    %949 = vmatpush1.msra.mxu0 %v231
    %950 = vmatprep.subr.mxu0 %v238
    %951 = vmatpush1.msra.mxu0 %v237
    %952 = vmatprep.subr.mxu0 %v244
    %953 = vmatpush1.msra.mxu0 %v243
    %954 = vmatprep.subr.mxu0 %v250
    %955 = vmatpush1.msra.mxu0 %v249
    %956 = vmatprep.subr.mxu0 %v256
    %957 = vmatpush1.msra.mxu0 %v255
    %958 = vmatprep.mubr.f32.mxu0 %v645
    %959 = vmatmul.mubr.f32.gmra.mrb[0].mxu0 %v644
    %v960 = vpop.f32.mrb[0].mxu0
    %v961 = vadd.f32 %v662, %v960
    %v962 = vpop.f32.mrb[0].mxu0
    %v963 = vadd.f32 %v666, %v962
    %964 = vdwg.mxu0
    %965 = vmatprep.subr.mxu0 %v262
    %966 = vmatpush1.msra.mxu0 %v261
    %967 = vmatprep.subr.mxu0 %v268
    %968 = vmatpush1.msra.mxu0 %v267
    %969 = vmatprep.subr.mxu0 %v274
    %970 = vmatpush1.msra.mxu0 %v273
    %971 = vmatprep.subr.mxu0 %v280
    %972 = vmatpush1.msra.mxu0 %v279
    %973 = vmatprep.subr.mxu0 %v286
    %974 = vmatpush1.msra.mxu0 %v285
    %975 = vmatprep.subr.mxu0 %v292
    %976 = vmatpush1.msra.mxu0 %v291
    %977 = vmatprep.subr.mxu0 %v298
    %978 = vmatpush1.msra.mxu0 %v297
    %979 = vmatprep.subr.mxu0 %v304
    %980 = vmatpush1.msra.mxu0 %v303
    %981 = vmatprep.subr.mxu0 %v310
    %982 = vmatpush1.msra.mxu0 %v309
    %983 = vmatprep.subr.mxu0 %v316
    %984 = vmatpush1.msra.mxu0 %v315
    %985 = vmatprep.subr.mxu0 %v322
    %986 = vmatpush1.msra.mxu0 %v321
    %987 = vmatprep.subr.mxu0 %v328
    %988 = vmatpush1.msra.mxu0 %v327
    %989 = vmatprep.subr.mxu0 %v334
    %990 = vmatpush1.msra.mxu0 %v333
    %991 = vmatprep.subr.mxu0 %v340
    %992 = vmatpush1.msra.mxu0 %v339
    %993 = vmatprep.subr.mxu0 %v346
    %994 = vmatpush1.msra.mxu0 %v345
    %995 = vmatprep.subr.mxu0 %v352
    %996 = vmatpush1.msra.mxu0 %v351
    %997 = vmatprep.subr.mxu0 %v358
    %998 = vmatpush1.msra.mxu0 %v357
    %999 = vmatprep.subr.mxu0 %v364
    %1000 = vmatpush1.msra.mxu0 %v363
    %1001 = vmatprep.subr.mxu0 %v370
    %1002 = vmatpush1.msra.mxu0 %v369
    %1003 = vmatprep.subr.mxu0 %v376
    %1004 = vmatpush1.msra.mxu0 %v375
    %1005 = vmatprep.subr.mxu0 %v382
    %1006 = vmatpush1.msra.mxu0 %v381
    %1007 = vmatprep.subr.mxu0 %v388
    %1008 = vmatpush1.msra.mxu0 %v387
    %1009 = vmatprep.subr.mxu0 %v394
    %1010 = vmatpush1.msra.mxu0 %v393
    %1011 = vmatprep.subr.mxu0 %v400
    %1012 = vmatpush1.msra.mxu0 %v399
    %1013 = vmatprep.subr.mxu0 %v406
    %1014 = vmatpush1.msra.mxu0 %v405
    %1015 = vmatprep.subr.mxu0 %v412
    %1016 = vmatpush1.msra.mxu0 %v411
    %1017 = vmatprep.subr.mxu0 %v418
    %1018 = vmatpush1.msra.mxu0 %v417
    %1019 = vmatprep.subr.mxu0 %v424
    %1020 = vmatpush1.msra.mxu0 %v423
    %1021 = vmatprep.subr.mxu0 %v430
    %1022 = vmatpush1.msra.mxu0 %v429
    %1023 = vmatprep.subr.mxu0 %v436
    %1024 = vmatpush1.msra.mxu0 %v435
    %1025 = vmatprep.subr.mxu0 %v442
    %1026 = vmatpush1.msra.mxu0 %v441
    %1027 = vmatprep.subr.mxu0 %v448
    %1028 = vmatpush1.msra.mxu0 %v447
    %1029 = vmatprep.mubr.f32.mxu0 %v647
    %1030 = vmatmul.mubr.f32.gmra.mrb[0].mxu0 %v646
    %v1031 = vpop.f32.mrb[0].mxu0
    %v1032 = vadd.f32 %v961, %v1031
    %v1033 = vpop.f32.mrb[0].mxu0
    %v1034 = vadd.f32 %v963, %v1033
    %1035 = vdwg.mxu0
    %1036 = vmatprep.subr.mxu0 %v454
    %1037 = vmatpush1.msra.mxu0 %v453
    %1038 = vmatprep.subr.mxu0 %v460
    %1039 = vmatpush1.msra.mxu0 %v459
    %1040 = vmatprep.subr.mxu0 %v466
    %1041 = vmatpush1.msra.mxu0 %v465
    %1042 = vmatprep.subr.mxu0 %v472
    %1043 = vmatpush1.msra.mxu0 %v471
    %1044 = vmatprep.subr.mxu0 %v478
    %1045 = vmatpush1.msra.mxu0 %v477
    %1046 = vmatprep.subr.mxu0 %v484
    %1047 = vmatpush1.msra.mxu0 %v483
    %1048 = vmatprep.subr.mxu0 %v490
    %1049 = vmatpush1.msra.mxu0 %v489
    %1050 = vmatprep.subr.mxu0 %v496
    %1051 = vmatpush1.msra.mxu0 %v495
    %1052 = vmatprep.subr.mxu0 %v502
    %1053 = vmatpush1.msra.mxu0 %v501
    %1054 = vmatprep.subr.mxu0 %v508
    %1055 = vmatpush1.msra.mxu0 %v507
    %1056 = vmatprep.subr.mxu0 %v514
    %1057 = vmatpush1.msra.mxu0 %v513
    %1058 = vmatprep.subr.mxu0 %v520
    %1059 = vmatpush1.msra.mxu0 %v519
    %1060 = vmatprep.subr.mxu0 %v526
    %1061 = vmatpush1.msra.mxu0 %v525
    %1062 = vmatprep.subr.mxu0 %v532
    %1063 = vmatpush1.msra.mxu0 %v531
    %1064 = vmatprep.subr.mxu0 %v538
    %1065 = vmatpush1.msra.mxu0 %v537
    %1066 = vmatprep.subr.mxu0 %v544
    %1067 = vmatpush1.msra.mxu0 %v543
    %1068 = vmatprep.subr.mxu0 %v550
    %1069 = vmatpush1.msra.mxu0 %v549
    %1070 = vmatprep.subr.mxu0 %v556
    %1071 = vmatpush1.msra.mxu0 %v555
    %1072 = vmatprep.subr.mxu0 %v562
    %1073 = vmatpush1.msra.mxu0 %v561
    %1074 = vmatprep.subr.mxu0 %v568
    %1075 = vmatpush1.msra.mxu0 %v567
    %1076 = vmatprep.subr.mxu0 %v574
    %1077 = vmatpush1.msra.mxu0 %v573
    %1078 = vmatprep.subr.mxu0 %v580
    %1079 = vmatpush1.msra.mxu0 %v579
    %1080 = vmatprep.subr.mxu0 %v586
    %1081 = vmatpush1.msra.mxu0 %v585
    %1082 = vmatprep.subr.mxu0 %v592
    %1083 = vmatpush1.msra.mxu0 %v591
    %1084 = vmatprep.subr.mxu0 %v598
    %1085 = vmatpush1.msra.mxu0 %v597
    %1086 = vmatprep.subr.mxu0 %v604
    %1087 = vmatpush1.msra.mxu0 %v603
    %1088 = vmatprep.subr.mxu0 %v610
    %1089 = vmatpush1.msra.mxu0 %v609
    %1090 = vmatprep.subr.mxu0 %v616
    %1091 = vmatpush1.msra.mxu0 %v615
    %1092 = vmatprep.subr.mxu0 %v622
    %1093 = vmatpush1.msra.mxu0 %v621
    %1094 = vmatprep.subr.mxu0 %v628
    %1095 = vmatpush1.msra.mxu0 %v627
    %1096 = vmatprep.subr.mxu0 %v634
    %1097 = vmatpush1.msra.mxu0 %v633
    %1098 = vmatprep.subr.mxu0 %v640
    %1099 = vmatpush1.msra.mxu0 %v639
    %1100 = vmatprep.mubr.f32.mxu0 %v649
    %1101 = vmatmul.mubr.f32.gmra.mrb[0].mxu0 %v648
    %v1102 = vpop.f32.mrb[0].mxu0
    %v1103 = vadd.f32 %v1032, %v1102
    %v1104 = vpop.f32.mrb[0].mxu0
    %v1105 = vadd.f32 %v1034, %v1104
    %1106 = vdwg.mxu0
    %1107 = vmatprep.subr.mxu0 %v72
    %1108 = vmatpush1.msra.mxu0 %v71
    %1109 = vmatprep.subr.mxu0 %v78
    %1110 = vmatpush1.msra.mxu0 %v77
    %1111 = vmatprep.subr.mxu0 %v84
    %1112 = vmatpush1.msra.mxu0 %v83
    %1113 = vmatprep.subr.mxu0 %v90
    %1114 = vmatpush1.msra.mxu0 %v89
    %1115 = vmatprep.subr.mxu0 %v96
    %1116 = vmatpush1.msra.mxu0 %v95
    %1117 = vmatprep.subr.mxu0 %v102
    %1118 = vmatpush1.msra.mxu0 %v101
    %1119 = vmatprep.subr.mxu0 %v108
    %1120 = vmatpush1.msra.mxu0 %v107
    %1121 = vmatprep.subr.mxu0 %v114
    %1122 = vmatpush1.msra.mxu0 %v113
    %1123 = vmatprep.subr.mxu0 %v120
    %1124 = vmatpush1.msra.mxu0 %v119
    %1125 = vmatprep.subr.mxu0 %v126
    %1126 = vmatpush1.msra.mxu0 %v125
    %1127 = vmatprep.subr.mxu0 %v132
    %1128 = vmatpush1.msra.mxu0 %v131
    %1129 = vmatprep.subr.mxu0 %v138
    %1130 = vmatpush1.msra.mxu0 %v137
    %1131 = vmatprep.subr.mxu0 %v144
    %1132 = vmatpush1.msra.mxu0 %v143
    %1133 = vmatprep.subr.mxu0 %v150
    %1134 = vmatpush1.msra.mxu0 %v149
    %1135 = vmatprep.subr.mxu0 %v156
    %1136 = vmatpush1.msra.mxu0 %v155
    %1137 = vmatprep.subr.mxu0 %v162
    %1138 = vmatpush1.msra.mxu0 %v161
    %1139 = vmatprep.subr.mxu0 %v168
    %1140 = vmatpush1.msra.mxu0 %v167
    %1141 = vmatprep.subr.mxu0 %v174
    %1142 = vmatpush1.msra.mxu0 %v173
    %1143 = vmatprep.subr.mxu0 %v180
    %1144 = vmatpush1.msra.mxu0 %v179
    %1145 = vmatprep.subr.mxu0 %v186
    %1146 = vmatpush1.msra.mxu0 %v185
    %1147 = vmatprep.subr.mxu0 %v192
    %1148 = vmatpush1.msra.mxu0 %v191
    %1149 = vmatprep.subr.mxu0 %v198
    %1150 = vmatpush1.msra.mxu0 %v197
    %1151 = vmatprep.subr.mxu0 %v204
    %1152 = vmatpush1.msra.mxu0 %v203
    %1153 = vmatprep.subr.mxu0 %v210
    %1154 = vmatpush1.msra.mxu0 %v209
    %1155 = vmatprep.subr.mxu0 %v216
    %1156 = vmatpush1.msra.mxu0 %v215
    %1157 = vmatprep.subr.mxu0 %v222
    %1158 = vmatpush1.msra.mxu0 %v221
    %1159 = vmatprep.subr.mxu0 %v228
    %1160 = vmatpush1.msra.mxu0 %v227
    %1161 = vmatprep.subr.mxu0 %v234
    %1162 = vmatpush1.msra.mxu0 %v233
    %1163 = vmatprep.subr.mxu0 %v240
    %1164 = vmatpush1.msra.mxu0 %v239
    %1165 = vmatprep.subr.mxu0 %v246
    %1166 = vmatpush1.msra.mxu0 %v245
    %1167 = vmatprep.subr.mxu0 %v252
    %1168 = vmatpush1.msra.mxu0 %v251
    %1169 = vmatprep.subr.mxu0 %v258
    %1170 = vmatpush1.msra.mxu0 %v257
    %1171 = vmatprep.mubr.f32.mxu0 %v645
    %1172 = vmatmul.mubr.f32.gmra.mrb[0].mxu0 %v644
    %v1173 = vpop.f32.mrb[0].mxu0
    %v1174 = vadd.f32 %v670, %v1173
    %v1175 = vpop.f32.mrb[0].mxu0
    %v1176 = vadd.f32 %v674, %v1175
    %1177 = vdwg.mxu0
    %1178 = vmatprep.subr.mxu0 %v264
    %1179 = vmatpush1.msra.mxu0 %v263
    %1180 = vmatprep.subr.mxu0 %v270
    %1181 = vmatpush1.msra.mxu0 %v269
    %1182 = vmatprep.subr.mxu0 %v276
    %1183 = vmatpush1.msra.mxu0 %v275
    %1184 = vmatprep.subr.mxu0 %v282
    %1185 = vmatpush1.msra.mxu0 %v281
    %1186 = vmatprep.subr.mxu0 %v288
    %1187 = vmatpush1.msra.mxu0 %v287
    %1188 = vmatprep.subr.mxu0 %v294
    %1189 = vmatpush1.msra.mxu0 %v293
    %1190 = vmatprep.subr.mxu0 %v300
    %1191 = vmatpush1.msra.mxu0 %v299
    %1192 = vmatprep.subr.mxu0 %v306
    %1193 = vmatpush1.msra.mxu0 %v305
    %1194 = vmatprep.subr.mxu0 %v312
    %1195 = vmatpush1.msra.mxu0 %v311
    %1196 = vmatprep.subr.mxu0 %v318
    %1197 = vmatpush1.msra.mxu0 %v317
    %1198 = vmatprep.subr.mxu0 %v324
    %1199 = vmatpush1.msra.mxu0 %v323
    %1200 = vmatprep.subr.mxu0 %v330
    %1201 = vmatpush1.msra.mxu0 %v329
    %1202 = vmatprep.subr.mxu0 %v336
    %1203 = vmatpush1.msra.mxu0 %v335
    %1204 = vmatprep.subr.mxu0 %v342
    %1205 = vmatpush1.msra.mxu0 %v341
    %1206 = vmatprep.subr.mxu0 %v348
    %1207 = vmatpush1.msra.mxu0 %v347
    %1208 = vmatprep.subr.mxu0 %v354
    %1209 = vmatpush1.msra.mxu0 %v353
    %1210 = vmatprep.subr.mxu0 %v360
    %1211 = vmatpush1.msra.mxu0 %v359
    %1212 = vmatprep.subr.mxu0 %v366
    %1213 = vmatpush1.msra.mxu0 %v365
    %1214 = vmatprep.subr.mxu0 %v372
    %1215 = vmatpush1.msra.mxu0 %v371
    %1216 = vmatprep.subr.mxu0 %v378
    %1217 = vmatpush1.msra.mxu0 %v377
    %1218 = vmatprep.subr.mxu0 %v384
    %1219 = vmatpush1.msra.mxu0 %v383
    %1220 = vmatprep.subr.mxu0 %v390
    %1221 = vmatpush1.msra.mxu0 %v389
    %1222 = vmatprep.subr.mxu0 %v396
    %1223 = vmatpush1.msra.mxu0 %v395
    %1224 = vmatprep.subr.mxu0 %v402
    %1225 = vmatpush1.msra.mxu0 %v401
    %1226 = vmatprep.subr.mxu0 %v408
    %1227 = vmatpush1.msra.mxu0 %v407
    %1228 = vmatprep.subr.mxu0 %v414
    %1229 = vmatpush1.msra.mxu0 %v413
    %1230 = vmatprep.subr.mxu0 %v420
    %1231 = vmatpush1.msra.mxu0 %v419
    %1232 = vmatprep.subr.mxu0 %v426
    %1233 = vmatpush1.msra.mxu0 %v425
    %1234 = vmatprep.subr.mxu0 %v432
    %1235 = vmatpush1.msra.mxu0 %v431
    %1236 = vmatprep.subr.mxu0 %v438
    %1237 = vmatpush1.msra.mxu0 %v437
    %1238 = vmatprep.subr.mxu0 %v444
    %1239 = vmatpush1.msra.mxu0 %v443
    %1240 = vmatprep.subr.mxu0 %v450
    %1241 = vmatpush1.msra.mxu0 %v449
    %1242 = vmatprep.mubr.f32.mxu0 %v647
    %1243 = vmatmul.mubr.f32.gmra.mrb[0].mxu0 %v646
    %v1244 = vpop.f32.mrb[0].mxu0
    %v1245 = vadd.f32 %v1174, %v1244
    %v1246 = vpop.f32.mrb[0].mxu0
    %v1247 = vadd.f32 %v1176, %v1246
    %1248 = vdwg.mxu0
    %1249 = vmatprep.subr.mxu0 %v456
    %1250 = vmatpush1.msra.mxu0 %v455
    %1251 = vmatprep.subr.mxu0 %v462
    %1252 = vmatpush1.msra.mxu0 %v461
    %1253 = vmatprep.subr.mxu0 %v468
    %1254 = vmatpush1.msra.mxu0 %v467
    %1255 = vmatprep.subr.mxu0 %v474
    %1256 = vmatpush1.msra.mxu0 %v473
    %1257 = vmatprep.subr.mxu0 %v480
    %1258 = vmatpush1.msra.mxu0 %v479
    %1259 = vmatprep.subr.mxu0 %v486
    %1260 = vmatpush1.msra.mxu0 %v485
    %1261 = vmatprep.subr.mxu0 %v492
    %1262 = vmatpush1.msra.mxu0 %v491
    %1263 = vmatprep.subr.mxu0 %v498
    %1264 = vmatpush1.msra.mxu0 %v497
    %1265 = vmatprep.subr.mxu0 %v504
    %1266 = vmatpush1.msra.mxu0 %v503
    %1267 = vmatprep.subr.mxu0 %v510
    %1268 = vmatpush1.msra.mxu0 %v509
    %1269 = vmatprep.subr.mxu0 %v516
    %1270 = vmatpush1.msra.mxu0 %v515
    %1271 = vmatprep.subr.mxu0 %v522
    %1272 = vmatpush1.msra.mxu0 %v521
    %1273 = vmatprep.subr.mxu0 %v528
    %1274 = vmatpush1.msra.mxu0 %v527
    %1275 = vmatprep.subr.mxu0 %v534
    %1276 = vmatpush1.msra.mxu0 %v533
    %1277 = vmatprep.subr.mxu0 %v540
    %1278 = vmatpush1.msra.mxu0 %v539
    %1279 = vmatprep.subr.mxu0 %v546
    %1280 = vmatpush1.msra.mxu0 %v545
    %1281 = vmatprep.subr.mxu0 %v552
    %1282 = vmatpush1.msra.mxu0 %v551
    %1283 = vmatprep.subr.mxu0 %v558
    %1284 = vmatpush1.msra.mxu0 %v557
    %1285 = vmatprep.subr.mxu0 %v564
    %1286 = vmatpush1.msra.mxu0 %v563
    %1287 = vmatprep.subr.mxu0 %v570
    %1288 = vmatpush1.msra.mxu0 %v569
    %1289 = vmatprep.subr.mxu0 %v576
    %1290 = vmatpush1.msra.mxu0 %v575
    %1291 = vmatprep.subr.mxu0 %v582
    %1292 = vmatpush1.msra.mxu0 %v581
    %1293 = vmatprep.subr.mxu0 %v588
    %1294 = vmatpush1.msra.mxu0 %v587
    %1295 = vmatprep.subr.mxu0 %v594
    %1296 = vmatpush1.msra.mxu0 %v593
    %1297 = vmatprep.subr.mxu0 %v600
    %1298 = vmatpush1.msra.mxu0 %v599
    %1299 = vmatprep.subr.mxu0 %v606
    %1300 = vmatpush1.msra.mxu0 %v605
    %1301 = vmatprep.subr.mxu0 %v612
    %1302 = vmatpush1.msra.mxu0 %v611
    %1303 = vmatprep.subr.mxu0 %v618
    %1304 = vmatpush1.msra.mxu0 %v617
    %1305 = vmatprep.subr.mxu0 %v624
    %1306 = vmatpush1.msra.mxu0 %v623
    %1307 = vmatprep.subr.mxu0 %v630
    %1308 = vmatpush1.msra.mxu0 %v629
    %1309 = vmatprep.subr.mxu0 %v636
    %1310 = vmatpush1.msra.mxu0 %v635
    %1311 = vmatprep.subr.mxu0 %v642
    %1312 = vmatpush1.msra.mxu0 %v641
    %1313 = vmatprep.mubr.f32.mxu0 %v649
    %1314 = vmatmul.mubr.f32.gmra.mrb[0].mxu0 %v648
    %v1315 = vpop.f32.mrb[0].mxu0
    %v1316 = vadd.f32 %v1245, %v1315
    %v1317 = vpop.f32.mrb[0].mxu0
    %v1318 = vadd.f32 %v1247, %v1317
    %1319 = vdwg.mxu0
    %1320 = vst [vmem:[#allocation10] sm:$0xff] %v890
    %1321 = vst [vmem:[#allocation10 + $0x8] sm:$0xff] %v892
    %1322 = vst [vmem:[#allocation10 + $0x10] sm:$0xff] %v1103
    %1323 = vst [vmem:[#allocation10 + $0x18] sm:$0xff] %v1105
    %1324 = vst [vmem:[#allocation10 + $0x20] sm:$0xff] %v1316
    %1325 = vst [vmem:[#allocation10 + $0x28] sm:$0xff] %v1318
    %v1326 = vld [vmem:[#allocation5] sm:$0xff]
    %v1327 = vld [vmem:[#allocation5 + $0x8] sm:$0xff]
    %v1328 = vld [vmem:[#allocation5 + $0x10] sm:$0xff]
    %v1329 = vld [vmem:[#allocation5 + $0x18] sm:$0xff]
    %v1330 = vld [vmem:[#allocation5 + $0x20] sm:$0xff]
    %v1331 = vld [vmem:[#allocation5 + $0x28] sm:$0xff]
    %1332 = vmatprep.subr.mxu0 %v68
    %1333 = vmatpush1.msra.mxu0 %v67
    %1334 = vmatprep.subr.mxu0 %v74
    %1335 = vmatpush1.msra.mxu0 %v73
    %1336 = vmatprep.subr.mxu0 %v80
    %1337 = vmatpush1.msra.mxu0 %v79
    %1338 = vmatprep.subr.mxu0 %v86
    %1339 = vmatpush1.msra.mxu0 %v85
    %1340 = vmatprep.subr.mxu0 %v92
    %1341 = vmatpush1.msra.mxu0 %v91
    %1342 = vmatprep.subr.mxu0 %v98
    %1343 = vmatpush1.msra.mxu0 %v97
    %1344 = vmatprep.subr.mxu0 %v104
    %1345 = vmatpush1.msra.mxu0 %v103
    %1346 = vmatprep.subr.mxu0 %v110
    %1347 = vmatpush1.msra.mxu0 %v109
    %1348 = vmatprep.subr.mxu0 %v116
    %1349 = vmatpush1.msra.mxu0 %v115
    %1350 = vmatprep.subr.mxu0 %v122
    %1351 = vmatpush1.msra.mxu0 %v121
    %1352 = vmatprep.subr.mxu0 %v128
    %1353 = vmatpush1.msra.mxu0 %v127
    %1354 = vmatprep.subr.mxu0 %v134
    %1355 = vmatpush1.msra.mxu0 %v133
    %1356 = vmatprep.subr.mxu0 %v140
    %1357 = vmatpush1.msra.mxu0 %v139
    %1358 = vmatprep.subr.mxu0 %v146
    %1359 = vmatpush1.msra.mxu0 %v145
    %1360 = vmatprep.subr.mxu0 %v152
    %1361 = vmatpush1.msra.mxu0 %v151
    %1362 = vmatprep.subr.mxu0 %v158
    %1363 = vmatpush1.msra.mxu0 %v157
    %1364 = vmatprep.subr.mxu0 %v164
    %1365 = vmatpush1.msra.mxu0 %v163
    %1366 = vmatprep.subr.mxu0 %v170
    %1367 = vmatpush1.msra.mxu0 %v169
    %1368 = vmatprep.subr.mxu0 %v176
    %1369 = vmatpush1.msra.mxu0 %v175
    %1370 = vmatprep.subr.mxu0 %v182
    %1371 = vmatpush1.msra.mxu0 %v181
    %1372 = vmatprep.subr.mxu0 %v188
    %1373 = vmatpush1.msra.mxu0 %v187
    %1374 = vmatprep.subr.mxu0 %v194
    %1375 = vmatpush1.msra.mxu0 %v193
    %1376 = vmatprep.subr.mxu0 %v200
    %1377 = vmatpush1.msra.mxu0 %v199
    %1378 = vmatprep.subr.mxu0 %v206
    %1379 = vmatpush1.msra.mxu0 %v205
    %1380 = vmatprep.subr.mxu0 %v212
    %1381 = vmatpush1.msra.mxu0 %v211
    %1382 = vmatprep.subr.mxu0 %v218
    %1383 = vmatpush1.msra.mxu0 %v217
    %1384 = vmatprep.subr.mxu0 %v224
    %1385 = vmatpush1.msra.mxu0 %v223
    %1386 = vmatprep.subr.mxu0 %v230
    %1387 = vmatpush1.msra.mxu0 %v229
    %1388 = vmatprep.subr.mxu0 %v236
    %1389 = vmatpush1.msra.mxu0 %v235
    %1390 = vmatprep.subr.mxu0 %v242
    %1391 = vmatpush1.msra.mxu0 %v241
    %1392 = vmatprep.subr.mxu0 %v248
    %1393 = vmatpush1.msra.mxu0 %v247
    %1394 = vmatprep.subr.mxu0 %v254
    %1395 = vmatpush1.msra.mxu0 %v253
    %1396 = vmatprep.mubr.f32.mxu0 %v1327
    %1397 = vmatmul.mubr.f32.gmra.mrb[0].mxu0 %v1326
    %v1398 = vpop.f32.mrb[0].mxu0
    %v1399 = vadd.f32 %v654, %v1398
    %v1400 = vpop.f32.mrb[0].mxu0
    %v1401 = vadd.f32 %v658, %v1400
    %1402 = vdwg.mxu0
    %1403 = vmatprep.subr.mxu0 %v260
    %1404 = vmatpush1.msra.mxu0 %v259
    %1405 = vmatprep.subr.mxu0 %v266
    %1406 = vmatpush1.msra.mxu0 %v265
    %1407 = vmatprep.subr.mxu0 %v272
    %1408 = vmatpush1.msra.mxu0 %v271
    %1409 = vmatprep.subr.mxu0 %v278
    %1410 = vmatpush1.msra.mxu0 %v277
    %1411 = vmatprep.subr.mxu0 %v284
    %1412 = vmatpush1.msra.mxu0 %v283
    %1413 = vmatprep.subr.mxu0 %v290
    %1414 = vmatpush1.msra.mxu0 %v289
    %1415 = vmatprep.subr.mxu0 %v296
    %1416 = vmatpush1.msra.mxu0 %v295
    %1417 = vmatprep.subr.mxu0 %v302
    %1418 = vmatpush1.msra.mxu0 %v301
    %1419 = vmatprep.subr.mxu0 %v308
    %1420 = vmatpush1.msra.mxu0 %v307
    %1421 = vmatprep.subr.mxu0 %v314
    %1422 = vmatpush1.msra.mxu0 %v313
    %1423 = vmatprep.subr.mxu0 %v320
    %1424 = vmatpush1.msra.mxu0 %v319
    %1425 = vmatprep.subr.mxu0 %v326
    %1426 = vmatpush1.msra.mxu0 %v325
    %1427 = vmatprep.subr.mxu0 %v332
    %1428 = vmatpush1.msra.mxu0 %v331
    %1429 = vmatprep.subr.mxu0 %v338
    %1430 = vmatpush1.msra.mxu0 %v337
    %1431 = vmatprep.subr.mxu0 %v344
    %1432 = vmatpush1.msra.mxu0 %v343
    %1433 = vmatprep.subr.mxu0 %v350
    %1434 = vmatpush1.msra.mxu0 %v349
    %1435 = vmatprep.subr.mxu0 %v356
    %1436 = vmatpush1.msra.mxu0 %v355
    %1437 = vmatprep.subr.mxu0 %v362
    %1438 = vmatpush1.msra.mxu0 %v361
    %1439 = vmatprep.subr.mxu0 %v368
    %1440 = vmatpush1.msra.mxu0 %v367
    %1441 = vmatprep.subr.mxu0 %v374
    %1442 = vmatpush1.msra.mxu0 %v373
    %1443 = vmatprep.subr.mxu0 %v380
    %1444 = vmatpush1.msra.mxu0 %v379
    %1445 = vmatprep.subr.mxu0 %v386
    %1446 = vmatpush1.msra.mxu0 %v385
    %1447 = vmatprep.subr.mxu0 %v392
    %1448 = vmatpush1.msra.mxu0 %v391
    %1449 = vmatprep.subr.mxu0 %v398
    %1450 = vmatpush1.msra.mxu0 %v397
    %1451 = vmatprep.subr.mxu0 %v404
    %1452 = vmatpush1.msra.mxu0 %v403
    %1453 = vmatprep.subr.mxu0 %v410
    %1454 = vmatpush1.msra.mxu0 %v409
    %1455 = vmatprep.subr.mxu0 %v416
    %1456 = vmatpush1.msra.mxu0 %v415
    %1457 = vmatprep.subr.mxu0 %v422
    %1458 = vmatpush1.msra.mxu0 %v421
    %1459 = vmatprep.subr.mxu0 %v428
    %1460 = vmatpush1.msra.mxu0 %v427
    %1461 = vmatprep.subr.mxu0 %v434
    %1462 = vmatpush1.msra.mxu0 %v433
    %1463 = vmatprep.subr.mxu0 %v440
    %1464 = vmatpush1.msra.mxu0 %v439
    %1465 = vmatprep.subr.mxu0 %v446
    %1466 = vmatpush1.msra.mxu0 %v445
    %1467 = vmatprep.mubr.f32.mxu0 %v1329
    %1468 = vmatmul.mubr.f32.gmra.mrb[0].mxu0 %v1328
    %v1469 = vpop.f32.mrb[0].mxu0
    %v1470 = vadd.f32 %v1399, %v1469
    %v1471 = vpop.f32.mrb[0].mxu0
    %v1472 = vadd.f32 %v1401, %v1471
    %1473 = vdwg.mxu0
    %1474 = vmatprep.subr.mxu0 %v452
    %1475 = vmatpush1.msra.mxu0 %v451
    %1476 = vmatprep.subr.mxu0 %v458
    %1477 = vmatpush1.msra.mxu0 %v457
    %1478 = vmatprep.subr.mxu0 %v464
    %1479 = vmatpush1.msra.mxu0 %v463
    %1480 = vmatprep.subr.mxu0 %v470
    %1481 = vmatpush1.msra.mxu0 %v469
    %1482 = vmatprep.subr.mxu0 %v476
    %1483 = vmatpush1.msra.mxu0 %v475
    %1484 = vmatprep.subr.mxu0 %v482
    %1485 = vmatpush1.msra.mxu0 %v481
    %1486 = vmatprep.subr.mxu0 %v488
    %1487 = vmatpush1.msra.mxu0 %v487
    %1488 = vmatprep.subr.mxu0 %v494
    %1489 = vmatpush1.msra.mxu0 %v493
    %1490 = vmatprep.subr.mxu0 %v500
    %1491 = vmatpush1.msra.mxu0 %v499
    %1492 = vmatprep.subr.mxu0 %v506
    %1493 = vmatpush1.msra.mxu0 %v505
    %1494 = vmatprep.subr.mxu0 %v512
    %1495 = vmatpush1.msra.mxu0 %v511
    %1496 = vmatprep.subr.mxu0 %v518
    %1497 = vmatpush1.msra.mxu0 %v517
    %1498 = vmatprep.subr.mxu0 %v524
    %1499 = vmatpush1.msra.mxu0 %v523
    %1500 = vmatprep.subr.mxu0 %v530
    %1501 = vmatpush1.msra.mxu0 %v529
    %1502 = vmatprep.subr.mxu0 %v536
    %1503 = vmatpush1.msra.mxu0 %v535
    %1504 = vmatprep.subr.mxu0 %v542
    %1505 = vmatpush1.msra.mxu0 %v541
    %1506 = vmatprep.subr.mxu0 %v548
    %1507 = vmatpush1.msra.mxu0 %v547
    %1508 = vmatprep.subr.mxu0 %v554
    %1509 = vmatpush1.msra.mxu0 %v553
    %1510 = vmatprep.subr.mxu0 %v560
    %1511 = vmatpush1.msra.mxu0 %v559
    %1512 = vmatprep.subr.mxu0 %v566
    %1513 = vmatpush1.msra.mxu0 %v565
    %1514 = vmatprep.subr.mxu0 %v572
    %1515 = vmatpush1.msra.mxu0 %v571
    %1516 = vmatprep.subr.mxu0 %v578
    %1517 = vmatpush1.msra.mxu0 %v577
    %1518 = vmatprep.subr.mxu0 %v584
    %1519 = vmatpush1.msra.mxu0 %v583
    %1520 = vmatprep.subr.mxu0 %v590
    %1521 = vmatpush1.msra.mxu0 %v589
    %1522 = vmatprep.subr.mxu0 %v596
    %1523 = vmatpush1.msra.mxu0 %v595
    %1524 = vmatprep.subr.mxu0 %v602
    %1525 = vmatpush1.msra.mxu0 %v601
    %1526 = vmatprep.subr.mxu0 %v608
    %1527 = vmatpush1.msra.mxu0 %v607
    %1528 = vmatprep.subr.mxu0 %v614
    %1529 = vmatpush1.msra.mxu0 %v613
    %1530 = vmatprep.subr.mxu0 %v620
    %1531 = vmatpush1.msra.mxu0 %v619
    %1532 = vmatprep.subr.mxu0 %v626
    %1533 = vmatpush1.msra.mxu0 %v625
    %1534 = vmatprep.subr.mxu0 %v632
    %1535 = vmatpush1.msra.mxu0 %v631
    %1536 = vmatprep.subr.mxu0 %v638
    %1537 = vmatpush1.msra.mxu0 %v637
    %1538 = vmatprep.mubr.f32.mxu0 %v1331
    %1539 = vmatmul.mubr.f32.gmra.mrb[0].mxu0 %v1330
    %v1540 = vpop.f32.mrb[0].mxu0
    %v1541 = vadd.f32 %v1470, %v1540
    %v1542 = vpop.f32.mrb[0].mxu0
    %v1543 = vadd.f32 %v1472, %v1542
    %1544 = vdwg.mxu0
    %1545 = vmatprep.subr.mxu0 %v70
    %1546 = vmatpush1.msra.mxu0 %v69
    %1547 = vmatprep.subr.mxu0 %v76
    %1548 = vmatpush1.msra.mxu0 %v75
    %1549 = vmatprep.subr.mxu0 %v82
    %1550 = vmatpush1.msra.mxu0 %v81
    %1551 = vmatprep.subr.mxu0 %v88
    %1552 = vmatpush1.msra.mxu0 %v87
    %1553 = vmatprep.subr.mxu0 %v94
    %1554 = vmatpush1.msra.mxu0 %v93
    %1555 = vmatprep.subr.mxu0 %v100
    %1556 = vmatpush1.msra.mxu0 %v99
    %1557 = vmatprep.subr.mxu0 %v106
    %1558 = vmatpush1.msra.mxu0 %v105
    %1559 = vmatprep.subr.mxu0 %v112
    %1560 = vmatpush1.msra.mxu0 %v111
    %1561 = vmatprep.subr.mxu0 %v118
    %1562 = vmatpush1.msra.mxu0 %v117
    %1563 = vmatprep.subr.mxu0 %v124
    %1564 = vmatpush1.msra.mxu0 %v123
    %1565 = vmatprep.subr.mxu0 %v130
    %1566 = vmatpush1.msra.mxu0 %v129
    %1567 = vmatprep.subr.mxu0 %v136
    %1568 = vmatpush1.msra.mxu0 %v135
    %1569 = vmatprep.subr.mxu0 %v142
    %1570 = vmatpush1.msra.mxu0 %v141
    %1571 = vmatprep.subr.mxu0 %v148
    %1572 = vmatpush1.msra.mxu0 %v147
    %1573 = vmatprep.subr.mxu0 %v154
    %1574 = vmatpush1.msra.mxu0 %v153
    %1575 = vmatprep.subr.mxu0 %v160
    %1576 = vmatpush1.msra.mxu0 %v159
    %1577 = vmatprep.subr.mxu0 %v166
    %1578 = vmatpush1.msra.mxu0 %v165
    %1579 = vmatprep.subr.mxu0 %v172
    %1580 = vmatpush1.msra.mxu0 %v171
    %1581 = vmatprep.subr.mxu0 %v178
    %1582 = vmatpush1.msra.mxu0 %v177
    %1583 = vmatprep.subr.mxu0 %v184
    %1584 = vmatpush1.msra.mxu0 %v183
    %1585 = vmatprep.subr.mxu0 %v190
    %1586 = vmatpush1.msra.mxu0 %v189
    %1587 = vmatprep.subr.mxu0 %v196
    %1588 = vmatpush1.msra.mxu0 %v195
    %1589 = vmatprep.subr.mxu0 %v202
    %1590 = vmatpush1.msra.mxu0 %v201
    %1591 = vmatprep.subr.mxu0 %v208
    %1592 = vmatpush1.msra.mxu0 %v207
    %1593 = vmatprep.subr.mxu0 %v214
    %1594 = vmatpush1.msra.mxu0 %v213
    %1595 = vmatprep.subr.mxu0 %v220
    %1596 = vmatpush1.msra.mxu0 %v219
    %1597 = vmatprep.subr.mxu0 %v226
    %1598 = vmatpush1.msra.mxu0 %v225
    %1599 = vmatprep.subr.mxu0 %v232
    %1600 = vmatpush1.msra.mxu0 %v231
    %1601 = vmatprep.subr.mxu0 %v238
    %1602 = vmatpush1.msra.mxu0 %v237
    %1603 = vmatprep.subr.mxu0 %v244
    %1604 = vmatpush1.msra.mxu0 %v243
    %1605 = vmatprep.subr.mxu0 %v250
    %1606 = vmatpush1.msra.mxu0 %v249
    %1607 = vmatprep.subr.mxu0 %v256
    %1608 = vmatpush1.msra.mxu0 %v255
    %1609 = vmatprep.mubr.f32.mxu0 %v1327
    %1610 = vmatmul.mubr.f32.gmra.mrb[0].mxu0 %v1326
    %v1611 = vpop.f32.mrb[0].mxu0
    %v1612 = vadd.f32 %v662, %v1611
    %v1613 = vpop.f32.mrb[0].mxu0
    %v1614 = vadd.f32 %v666, %v1613
    %1615 = vdwg.mxu0
    %1616 = vmatprep.subr.mxu0 %v262
    %1617 = vmatpush1.msra.mxu0 %v261
    %1618 = vmatprep.subr.mxu0 %v268
    %1619 = vmatpush1.msra.mxu0 %v267
    %1620 = vmatprep.subr.mxu0 %v274
    %1621 = vmatpush1.msra.mxu0 %v273
    %1622 = vmatprep.subr.mxu0 %v280
    %1623 = vmatpush1.msra.mxu0 %v279
    %1624 = vmatprep.subr.mxu0 %v286
    %1625 = vmatpush1.msra.mxu0 %v285
    %1626 = vmatprep.subr.mxu0 %v292
    %1627 = vmatpush1.msra.mxu0 %v291
    %1628 = vmatprep.subr.mxu0 %v298
    %1629 = vmatpush1.msra.mxu0 %v297
    %1630 = vmatprep.subr.mxu0 %v304
    %1631 = vmatpush1.msra.mxu0 %v303
    %1632 = vmatprep.subr.mxu0 %v310
    %1633 = vmatpush1.msra.mxu0 %v309
    %1634 = vmatprep.subr.mxu0 %v316
    %1635 = vmatpush1.msra.mxu0 %v315
    %1636 = vmatprep.subr.mxu0 %v322
    %1637 = vmatpush1.msra.mxu0 %v321
    %1638 = vmatprep.subr.mxu0 %v328
    %1639 = vmatpush1.msra.mxu0 %v327
    %1640 = vmatprep.subr.mxu0 %v334
    %1641 = vmatpush1.msra.mxu0 %v333
    %1642 = vmatprep.subr.mxu0 %v340
    %1643 = vmatpush1.msra.mxu0 %v339
    %1644 = vmatprep.subr.mxu0 %v346
    %1645 = vmatpush1.msra.mxu0 %v345
    %1646 = vmatprep.subr.mxu0 %v352
    %1647 = vmatpush1.msra.mxu0 %v351
    %1648 = vmatprep.subr.mxu0 %v358
    %1649 = vmatpush1.msra.mxu0 %v357
    %1650 = vmatprep.subr.mxu0 %v364
    %1651 = vmatpush1.msra.mxu0 %v363
    %1652 = vmatprep.subr.mxu0 %v370
    %1653 = vmatpush1.msra.mxu0 %v369
    %1654 = vmatprep.subr.mxu0 %v376
    %1655 = vmatpush1.msra.mxu0 %v375
    %1656 = vmatprep.subr.mxu0 %v382
    %1657 = vmatpush1.msra.mxu0 %v381
    %1658 = vmatprep.subr.mxu0 %v388
    %1659 = vmatpush1.msra.mxu0 %v387
    %1660 = vmatprep.subr.mxu0 %v394
    %1661 = vmatpush1.msra.mxu0 %v393
    %1662 = vmatprep.subr.mxu0 %v400
    %1663 = vmatpush1.msra.mxu0 %v399
    %1664 = vmatprep.subr.mxu0 %v406
    %1665 = vmatpush1.msra.mxu0 %v405
    %1666 = vmatprep.subr.mxu0 %v412
    %1667 = vmatpush1.msra.mxu0 %v411
    %1668 = vmatprep.subr.mxu0 %v418
    %1669 = vmatpush1.msra.mxu0 %v417
    %1670 = vmatprep.subr.mxu0 %v424
    %1671 = vmatpush1.msra.mxu0 %v423
    %1672 = vmatprep.subr.mxu0 %v430
    %1673 = vmatpush1.msra.mxu0 %v429
    %1674 = vmatprep.subr.mxu0 %v436
    %1675 = vmatpush1.msra.mxu0 %v435
    %1676 = vmatprep.subr.mxu0 %v442
    %1677 = vmatpush1.msra.mxu0 %v441
    %1678 = vmatprep.subr.mxu0 %v448
    %1679 = vmatpush1.msra.mxu0 %v447
    %1680 = vmatprep.mubr.f32.mxu0 %v1329
    %1681 = vmatmul.mubr.f32.gmra.mrb[0].mxu0 %v1328
    %v1682 = vpop.f32.mrb[0].mxu0
    %v1683 = vadd.f32 %v1612, %v1682
    %v1684 = vpop.f32.mrb[0].mxu0
    %v1685 = vadd.f32 %v1614, %v1684
    %1686 = vdwg.mxu0
    %1687 = vmatprep.subr.mxu0 %v454
    %1688 = vmatpush1.msra.mxu0 %v453
    %1689 = vmatprep.subr.mxu0 %v460
    %1690 = vmatpush1.msra.mxu0 %v459
    %1691 = vmatprep.subr.mxu0 %v466
    %1692 = vmatpush1.msra.mxu0 %v465
    %1693 = vmatprep.subr.mxu0 %v472
    %1694 = vmatpush1.msra.mxu0 %v471
    %1695 = vmatprep.subr.mxu0 %v478
    %1696 = vmatpush1.msra.mxu0 %v477
    %1697 = vmatprep.subr.mxu0 %v484
    %1698 = vmatpush1.msra.mxu0 %v483
    %1699 = vmatprep.subr.mxu0 %v490
    %1700 = vmatpush1.msra.mxu0 %v489
    %1701 = vmatprep.subr.mxu0 %v496
    %1702 = vmatpush1.msra.mxu0 %v495
    %1703 = vmatprep.subr.mxu0 %v502
    %1704 = vmatpush1.msra.mxu0 %v501
    %1705 = vmatprep.subr.mxu0 %v508
    %1706 = vmatpush1.msra.mxu0 %v507
    %1707 = vmatprep.subr.mxu0 %v514
    %1708 = vmatpush1.msra.mxu0 %v513
    %1709 = vmatprep.subr.mxu0 %v520
    %1710 = vmatpush1.msra.mxu0 %v519
    %1711 = vmatprep.subr.mxu0 %v526
    %1712 = vmatpush1.msra.mxu0 %v525
    %1713 = vmatprep.subr.mxu0 %v532
    %1714 = vmatpush1.msra.mxu0 %v531
    %1715 = vmatprep.subr.mxu0 %v538
    %1716 = vmatpush1.msra.mxu0 %v537
    %1717 = vmatprep.subr.mxu0 %v544
    %1718 = vmatpush1.msra.mxu0 %v543
    %1719 = vmatprep.subr.mxu0 %v550
    %1720 = vmatpush1.msra.mxu0 %v549
    %1721 = vmatprep.subr.mxu0 %v556
    %1722 = vmatpush1.msra.mxu0 %v555
    %1723 = vmatprep.subr.mxu0 %v562
    %1724 = vmatpush1.msra.mxu0 %v561
    %1725 = vmatprep.subr.mxu0 %v568
    %1726 = vmatpush1.msra.mxu0 %v567
    %1727 = vmatprep.subr.mxu0 %v574
    %1728 = vmatpush1.msra.mxu0 %v573
    %1729 = vmatprep.subr.mxu0 %v580
    %1730 = vmatpush1.msra.mxu0 %v579
    %1731 = vmatprep.subr.mxu0 %v586
    %1732 = vmatpush1.msra.mxu0 %v585
    %1733 = vmatprep.subr.mxu0 %v592
    %1734 = vmatpush1.msra.mxu0 %v591
    %1735 = vmatprep.subr.mxu0 %v598
    %1736 = vmatpush1.msra.mxu0 %v597
    %1737 = vmatprep.subr.mxu0 %v604
    %1738 = vmatpush1.msra.mxu0 %v603
    %1739 = vmatprep.subr.mxu0 %v610
    %1740 = vmatpush1.msra.mxu0 %v609
    %1741 = vmatprep.subr.mxu0 %v616
    %1742 = vmatpush1.msra.mxu0 %v615
    %1743 = vmatprep.subr.mxu0 %v622
    %1744 = vmatpush1.msra.mxu0 %v621
    %1745 = vmatprep.subr.mxu0 %v628
    %1746 = vmatpush1.msra.mxu0 %v627
    %1747 = vmatprep.subr.mxu0 %v634
    %1748 = vmatpush1.msra.mxu0 %v633
    %1749 = vmatprep.subr.mxu0 %v640
    %1750 = vmatpush1.msra.mxu0 %v639
    %1751 = vmatprep.mubr.f32.mxu0 %v1331
    %1752 = vmatmul.mubr.f32.gmra.mrb[0].mxu0 %v1330
    %v1753 = vpop.f32.mrb[0].mxu0
    %v1754 = vadd.f32 %v1683, %v1753
    %v1755 = vpop.f32.mrb[0].mxu0
    %v1756 = vadd.f32 %v1685, %v1755
    %1757 = vdwg.mxu0
    %1758 = vmatprep.subr.mxu0 %v72
    %1759 = vmatpush1.msra.mxu0 %v71
    %1760 = vmatprep.subr.mxu0 %v78
    %1761 = vmatpush1.msra.mxu0 %v77
    %1762 = vmatprep.subr.mxu0 %v84
    %1763 = vmatpush1.msra.mxu0 %v83
    %1764 = vmatprep.subr.mxu0 %v90
    %1765 = vmatpush1.msra.mxu0 %v89
    %1766 = vmatprep.subr.mxu0 %v96
    %1767 = vmatpush1.msra.mxu0 %v95
    %1768 = vmatprep.subr.mxu0 %v102
    %1769 = vmatpush1.msra.mxu0 %v101
    %1770 = vmatprep.subr.mxu0 %v108
    %1771 = vmatpush1.msra.mxu0 %v107
    %1772 = vmatprep.subr.mxu0 %v114
    %1773 = vmatpush1.msra.mxu0 %v113
    %1774 = vmatprep.subr.mxu0 %v120
    %1775 = vmatpush1.msra.mxu0 %v119
    %1776 = vmatprep.subr.mxu0 %v126
    %1777 = vmatpush1.msra.mxu0 %v125
    %1778 = vmatprep.subr.mxu0 %v132
    %1779 = vmatpush1.msra.mxu0 %v131
    %1780 = vmatprep.subr.mxu0 %v138
    %1781 = vmatpush1.msra.mxu0 %v137
    %1782 = vmatprep.subr.mxu0 %v144
    %1783 = vmatpush1.msra.mxu0 %v143
    %1784 = vmatprep.subr.mxu0 %v150
    %1785 = vmatpush1.msra.mxu0 %v149
    %1786 = vmatprep.subr.mxu0 %v156
    %1787 = vmatpush1.msra.mxu0 %v155
    %1788 = vmatprep.subr.mxu0 %v162
    %1789 = vmatpush1.msra.mxu0 %v161
    %1790 = vmatprep.subr.mxu0 %v168
    %1791 = vmatpush1.msra.mxu0 %v167
    %1792 = vmatprep.subr.mxu0 %v174
    %1793 = vmatpush1.msra.mxu0 %v173
    %1794 = vmatprep.subr.mxu0 %v180
    %1795 = vmatpush1.msra.mxu0 %v179
    %1796 = vmatprep.subr.mxu0 %v186
    %1797 = vmatpush1.msra.mxu0 %v185
    %1798 = vmatprep.subr.mxu0 %v192
    %1799 = vmatpush1.msra.mxu0 %v191
    %1800 = vmatprep.subr.mxu0 %v198
    %1801 = vmatpush1.msra.mxu0 %v197
    %1802 = vmatprep.subr.mxu0 %v204
    %1803 = vmatpush1.msra.mxu0 %v203
    %1804 = vmatprep.subr.mxu0 %v210
    %1805 = vmatpush1.msra.mxu0 %v209
    %1806 = vmatprep.subr.mxu0 %v216
    %1807 = vmatpush1.msra.mxu0 %v215
    %1808 = vmatprep.subr.mxu0 %v222
    %1809 = vmatpush1.msra.mxu0 %v221
    %1810 = vmatprep.subr.mxu0 %v228
    %1811 = vmatpush1.msra.mxu0 %v227
    %1812 = vmatprep.subr.mxu0 %v234
    %1813 = vmatpush1.msra.mxu0 %v233
    %1814 = vmatprep.subr.mxu0 %v240
    %1815 = vmatpush1.msra.mxu0 %v239
    %1816 = vmatprep.subr.mxu0 %v246
    %1817 = vmatpush1.msra.mxu0 %v245
    %1818 = vmatprep.subr.mxu0 %v252
    %1819 = vmatpush1.msra.mxu0 %v251
    %1820 = vmatprep.subr.mxu0 %v258
    %1821 = vmatpush1.msra.mxu0 %v257
    %1822 = vmatprep.mubr.f32.mxu0 %v1327
    %1823 = vmatmul.mubr.f32.gmra.mrb[0].mxu0 %v1326
    %v1824 = vpop.f32.mrb[0].mxu0
    %v1825 = vadd.f32 %v670, %v1824
    %v1826 = vpop.f32.mrb[0].mxu0
    %v1827 = vadd.f32 %v674, %v1826
    %1828 = vdwg.mxu0
    %1829 = vmatprep.subr.mxu0 %v264
    %1830 = vmatpush1.msra.mxu0 %v263
    %1831 = vmatprep.subr.mxu0 %v270
    %1832 = vmatpush1.msra.mxu0 %v269
    %1833 = vmatprep.subr.mxu0 %v276
    %1834 = vmatpush1.msra.mxu0 %v275
    %1835 = vmatprep.subr.mxu0 %v282
    %1836 = vmatpush1.msra.mxu0 %v281
    %1837 = vmatprep.subr.mxu0 %v288
    %1838 = vmatpush1.msra.mxu0 %v287
    %1839 = vmatprep.subr.mxu0 %v294
    %1840 = vmatpush1.msra.mxu0 %v293
    %1841 = vmatprep.subr.mxu0 %v300
    %1842 = vmatpush1.msra.mxu0 %v299
    %1843 = vmatprep.subr.mxu0 %v306
    %1844 = vmatpush1.msra.mxu0 %v305
    %1845 = vmatprep.subr.mxu0 %v312
    %1846 = vmatpush1.msra.mxu0 %v311
    %1847 = vmatprep.subr.mxu0 %v318
    %1848 = vmatpush1.msra.mxu0 %v317
    %1849 = vmatprep.subr.mxu0 %v324
    %1850 = vmatpush1.msra.mxu0 %v323
    %1851 = vmatprep.subr.mxu0 %v330
    %1852 = vmatpush1.msra.mxu0 %v329
    %1853 = vmatprep.subr.mxu0 %v336
    %1854 = vmatpush1.msra.mxu0 %v335
    %1855 = vmatprep.subr.mxu0 %v342
    %1856 = vmatpush1.msra.mxu0 %v341
    %1857 = vmatprep.subr.mxu0 %v348
    %1858 = vmatpush1.msra.mxu0 %v347
    %1859 = vmatprep.subr.mxu0 %v354
    %1860 = vmatpush1.msra.mxu0 %v353
    %1861 = vmatprep.subr.mxu0 %v360
    %1862 = vmatpush1.msra.mxu0 %v359
    %1863 = vmatprep.subr.mxu0 %v366
    %1864 = vmatpush1.msra.mxu0 %v365
    %1865 = vmatprep.subr.mxu0 %v372
    %1866 = vmatpush1.msra.mxu0 %v371
    %1867 = vmatprep.subr.mxu0 %v378
    %1868 = vmatpush1.msra.mxu0 %v377
    %1869 = vmatprep.subr.mxu0 %v384
    %1870 = vmatpush1.msra.mxu0 %v383
    %1871 = vmatprep.subr.mxu0 %v390
    %1872 = vmatpush1.msra.mxu0 %v389
    %1873 = vmatprep.subr.mxu0 %v396
    %1874 = vmatpush1.msra.mxu0 %v395
    %1875 = vmatprep.subr.mxu0 %v402
    %1876 = vmatpush1.msra.mxu0 %v401
    %1877 = vmatprep.subr.mxu0 %v408
    %1878 = vmatpush1.msra.mxu0 %v407
    %1879 = vmatprep.subr.mxu0 %v414
    %1880 = vmatpush1.msra.mxu0 %v413
    %1881 = vmatprep.subr.mxu0 %v420
    %1882 = vmatpush1.msra.mxu0 %v419
    %1883 = vmatprep.subr.mxu0 %v426
    %1884 = vmatpush1.msra.mxu0 %v425
    %1885 = vmatprep.subr.mxu0 %v432
    %1886 = vmatpush1.msra.mxu0 %v431
    %1887 = vmatprep.subr.mxu0 %v438
    %1888 = vmatpush1.msra.mxu0 %v437
    %1889 = vmatprep.subr.mxu0 %v444
    %1890 = vmatpush1.msra.mxu0 %v443
    %1891 = vmatprep.subr.mxu0 %v450
    %1892 = vmatpush1.msra.mxu0 %v449
    %1893 = vmatprep.mubr.f32.mxu0 %v1329
    %1894 = vmatmul.mubr.f32.gmra.mrb[0].mxu0 %v1328
    %v1895 = vpop.f32.mrb[0].mxu0
    %v1896 = vadd.f32 %v1825, %v1895
    %v1897 = vpop.f32.mrb[0].mxu0
    %v1898 = vadd.f32 %v1827, %v1897
    %1899 = vdwg.mxu0
    %1900 = vmatprep.subr.mxu0 %v456
    %1901 = vmatpush1.msra.mxu0 %v455
    %1902 = vmatprep.subr.mxu0 %v462
    %1903 = vmatpush1.msra.mxu0 %v461
    %1904 = vmatprep.subr.mxu0 %v468
    %1905 = vmatpush1.msra.mxu0 %v467
    %1906 = vmatprep.subr.mxu0 %v474
    %1907 = vmatpush1.msra.mxu0 %v473
    %1908 = vmatprep.subr.mxu0 %v480
    %1909 = vmatpush1.msra.mxu0 %v479
    %1910 = vmatprep.subr.mxu0 %v486
    %1911 = vmatpush1.msra.mxu0 %v485
    %1912 = vmatprep.subr.mxu0 %v492
    %1913 = vmatpush1.msra.mxu0 %v491
    %1914 = vmatprep.subr.mxu0 %v498
    %1915 = vmatpush1.msra.mxu0 %v497
    %1916 = vmatprep.subr.mxu0 %v504
    %1917 = vmatpush1.msra.mxu0 %v503
    %1918 = vmatprep.subr.mxu0 %v510
    %1919 = vmatpush1.msra.mxu0 %v509
    %1920 = vmatprep.subr.mxu0 %v516
    %1921 = vmatpush1.msra.mxu0 %v515
    %1922 = vmatprep.subr.mxu0 %v522
    %1923 = vmatpush1.msra.mxu0 %v521
    %1924 = vmatprep.subr.mxu0 %v528
    %1925 = vmatpush1.msra.mxu0 %v527
    %1926 = vmatprep.subr.mxu0 %v534
    %1927 = vmatpush1.msra.mxu0 %v533
    %1928 = vmatprep.subr.mxu0 %v540
    %1929 = vmatpush1.msra.mxu0 %v539
    %1930 = vmatprep.subr.mxu0 %v546
    %1931 = vmatpush1.msra.mxu0 %v545
    %1932 = vmatprep.subr.mxu0 %v552
    %1933 = vmatpush1.msra.mxu0 %v551
    %1934 = vmatprep.subr.mxu0 %v558
    %1935 = vmatpush1.msra.mxu0 %v557
    %1936 = vmatprep.subr.mxu0 %v564
    %1937 = vmatpush1.msra.mxu0 %v563
    %1938 = vmatprep.subr.mxu0 %v570
    %1939 = vmatpush1.msra.mxu0 %v569
    %1940 = vmatprep.subr.mxu0 %v576
    %1941 = vmatpush1.msra.mxu0 %v575
    %1942 = vmatprep.subr.mxu0 %v582
    %1943 = vmatpush1.msra.mxu0 %v581
    %1944 = vmatprep.subr.mxu0 %v588
    %1945 = vmatpush1.msra.mxu0 %v587
    %1946 = vmatprep.subr.mxu0 %v594
    %1947 = vmatpush1.msra.mxu0 %v593
    %1948 = vmatprep.subr.mxu0 %v600
    %1949 = vmatpush1.msra.mxu0 %v599
    %1950 = vmatprep.subr.mxu0 %v606
    %1951 = vmatpush1.msra.mxu0 %v605
    %1952 = vmatprep.subr.mxu0 %v612
    %1953 = vmatpush1.msra.mxu0 %v611
    %1954 = vmatprep.subr.mxu0 %v618
    %1955 = vmatpush1.msra.mxu0 %v617
    %1956 = vmatprep.subr.mxu0 %v624
    %1957 = vmatpush1.msra.mxu0 %v623
    %1958 = vmatprep.subr.mxu0 %v630
    %1959 = vmatpush1.msra.mxu0 %v629
    %1960 = vmatprep.subr.mxu0 %v636
    %1961 = vmatpush1.msra.mxu0 %v635
    %1962 = vmatprep.subr.mxu0 %v642
    %1963 = vmatpush1.msra.mxu0 %v641
    %1964 = vmatprep.mubr.f32.mxu0 %v1331
    %1965 = vmatmul.mubr.f32.gmra.mrb[0].mxu0 %v1330
    %v1966 = vpop.f32.mrb[0].mxu0
    %v1967 = vadd.f32 %v1896, %v1966
    %v1968 = vpop.f32.mrb[0].mxu0
    %v1969 = vadd.f32 %v1898, %v1968
    %1970 = vdwg.mxu0
    %1971 = vst [vmem:[#allocation10 + $0x30] sm:$0xff] %v1541
    %1972 = vst [vmem:[#allocation10 + $0x38] sm:$0xff] %v1543
    %1973 = vst [vmem:[#allocation10 + $0x40] sm:$0xff] %v1754
    %1974 = vst [vmem:[#allocation10 + $0x48] sm:$0xff] %v1756
    %1975 = vst [vmem:[#allocation10 + $0x50] sm:$0xff] %v1967
    %1976 = vst [vmem:[#allocation10 + $0x58] sm:$0xff] %v1969
    // Predicated region
    $region34: #{tpu_custom_call.1} parent=1 // pred_check
      _
    $region35: #{tpu_custom_call.1} parent=1 // pred_check_branch
      %1978 = sbr.rel (0) target = $region37
    $region36: #{tpu_custom_call.1} parent=1 // pred_region
      %s1980 = ssub.s32 1536, 1536
      %1981 = vsyncadd [#allocation4], %s1980
      %s1983 = sshll.u32 [#allocation10], 4
      %s1984 = int_to_ptr.vmem [resolvable:$true] %s1983
      %1986 = dma.vmem_to_hbm [thread:$0]  %s1984, 1536, %s4, [#allocation4]
    $region37: #{tpu_custom_call.1} parent=1 // pred_fallthru
      _
    // Predicated region
    $region38: #{tpu_custom_call.1} parent=1 // pred_check
      _
    $region39: #{tpu_custom_call.1} parent=1 // pred_check_branch
      %1988 = sbr.rel (0) target = $region41
    $region40: #{tpu_custom_call.1} parent=1 // pred_region
      %1989 = dma.done [#allocation4], 1536
    $region41: #{tpu_custom_call.1} parent=1 // pred_fallthru
      _
    %1990 = vsyncpa [#allocation3], 1
    %1991 = vsyncpa [#allocation6], 1
    %1992 = vsyncpa [#allocation9], 1
    %1993 = vsyncpa [#allocation4], 1

</llo_original>
